<compile_context>
chip_gen: v7x
topology: tpu7x:2x2x1
jax: 0.10.0
libtpu: 0.0.40
codegen_flags: <defaults>
</compile_context>

<pallas_src>
import functools
import math

import jax
import jax.numpy as jnp
from jax.experimental import pallas as pl
from jax.experimental.pallas import tpu as pltpu

LN_EPS = 1e-12


def _layer_norm(x, gamma, beta):
    mu = jnp.mean(x, axis=-1, keepdims=True)
    xc = x - mu
    var = jnp.mean(xc * xc, axis=-1, keepdims=True)
    return xc * jax.lax.rsqrt(var + LN_EPS) * gamma + beta


def _gelu(x):
    # TODO(synk): BERT uses exact erf-based GELU; tanh approximation used here
    # (erf lowering on Mosaic not guaranteed); max deviation ~1e-3.
    c = math.sqrt(2.0 / math.pi)
    return 0.5 * x * (1.0 + jnp.tanh(c * (x + 0.044715 * x * x * x)))


def bert_stack_kernel(
    x_ref, mask_ref,
    wqkv_ref, bqkv_ref, wo_ref, wi_ref, w2_ref, pvec_ref, bi_ref,
    out_ref,
    h_scratch,
    *, num_heads, batch_tile, seq_len, write_every_layer,
):
    l = pl.program_id(1)                       # layer index (inner, sequential axis)

    # First layer for this batch tile: load the hidden state from HBM input.
    @pl.when(l == 0)
    def _():
        h_scratch[...] = x_ref[...]

    x = h_scratch[...]                         # (Bt*S, H) f32, carried across layers
    H = x.shape[-1]
    S = seq_len
    Bt = batch_tile
    dh = H // num_heads

    pvec = pvec_ref[...]                       # (6, H): bo, g1, be1, b2, g2, be2
    bo, g1, be1 = pvec[0:1, :], pvec[1:2, :], pvec[2:3, :]
    b2, g2, be2 = pvec[3:4, :], pvec[4:5, :], pvec[5:6, :]

    mask = mask_ref[...]                       # (Bt, 1, S) additive mask (0 / -10000)

    x_bf = x.astype(jnp.bfloat16)

    # --- BertSelfAttention: fused QKV, one (Bt*S,H)@(H,3H) MXU dispatch ---
    # 1/sqrt(d_head) is already folded into Wq / bq (prepare_params).
    qkv = jnp.dot(x_bf, wqkv_ref[...], preferred_element_type=jnp.float32)
    qkv = qkv + bqkv_ref[...]                  # (Bt*S, 3H) f32
    qkv_bf = qkv.astype(jnp.bfloat16)

    # Per-(batch element, head) attention; heads sliced straight from the fused
    # QKV result (no (NH,S,d) stack copies), score tensor live set = (S,S).
    ctx_rows = []
    for b in range(Bt):
        rows = slice(b * S, (b + 1) * S)
        mask_b = mask[b]                       # (1, S), broadcasts over query rows
        ctx_heads = []
        for h in range(num_heads):
            q_h = qkv_bf[rows, 0 * H + h * dh:0 * H + (h + 1) * dh]   # (S, dh)
            k_h = qkv_bf[rows, 1 * H + h * dh:1 * H + (h + 1) * dh]
            v_h = qkv_bf[rows, 2 * H + h * dh:2 * H + (h + 1) * dh]
            s = jnp.einsum('qd,kd->qk', q_h, k_h,
                           preferred_element_type=jnp.float32)        # (S, S) f32
            s = s + mask_b
            s = s - jnp.max(s, axis=-1, keepdims=True)
            p = jnp.exp(s)
            p = p * pl.reciprocal(jnp.sum(p, axis=-1, keepdims=True), approx=True)
            # dropout(p) -> identity (eval mode)
            ctx_heads.append(jnp.dot(p.astype(jnp.bfloat16), v_h,
                                     preferred_element_type=jnp.float32))  # (S, dh)
        ctx_rows.append(jnp.concatenate(ctx_heads, axis=-1))          # (S, H)
    ctx = ctx_rows[0] if Bt == 1 else jnp.concatenate(ctx_rows, axis=0)   # (Bt*S, H)

    # --- BertSelfOutput: dense + (dropout=identity) + LayerNorm(residual) ---
    attn = jnp.dot(ctx.astype(jnp.bfloat16), wo_ref[...],
                   preferred_element_type=jnp.float32) + bo
    h1 = _layer_norm(attn + x, g1, be1)

    # --- BertIntermediate: dense + GELU ---
    inter = jnp.dot(h1.astype(jnp.bfloat16), wi_ref[...],
                    preferred_element_type=jnp.float32) + bi_ref[...]
    inter = _gelu(inter)

    # --- BertOutput: dense + (dropout=identity) + LayerNorm(residual) ---
    ffn = jnp.dot(inter.astype(jnp.bfloat16), w2_ref[...],
                  preferred_element_type=jnp.float32) + b2
    out = _layer_norm(ffn + h1, g2, be2)

    h_scratch[...] = out                       # carry to layer l + 1

    if write_every_layer:
        out_ref[...] = out.astype(out_ref.dtype)
    else:
        @pl.when(l == pl.num_programs(1) - 1)
        def _():
            out_ref[...] = out.astype(out_ref.dtype)


def prepare_params(params, num_heads):
    """One-time host-side packing of per-layer parameters into kernel-ready arrays.

    Folds 1/sqrt(d_head) into Wq/bq, fuses Q/K/V into one (L,H,3H) bf16 weight,
    and packs the small per-layer vectors into (L,6,H) so the kernel streams 7
    per-layer arrays instead of 18.
    """
    H = params[0]["wq"].shape[0]
    I = params[0]["wi"].shape[1]
    scale = 1.0 / math.sqrt(H // num_heads)

    def stack(name):
        return jnp.stack([p[name] for p in params], axis=0).astype(jnp.float32)

    wqkv = jnp.concatenate([stack("wq") * scale, stack("wk"), stack("wv")],
                           axis=-1).astype(jnp.bfloat16)            # (L, H, 3H)
    bqkv = jnp.concatenate([stack("bq") * scale, stack("bk"), stack("bv")],
                           axis=-1)                                 # (L, 1, 3H) f32
    pvec = jnp.concatenate(
        [stack(n) for n in ("bo", "g1", "be1", "b2", "g2", "be2")], axis=1)  # (L,6,H)
    return dict(
        wqkv=wqkv, bqkv=bqkv,
        wo=stack("wo").astype(jnp.bfloat16),
        wi=stack("wi").astype(jnp.bfloat16),
        w2=stack("w2").astype(jnp.bfloat16),
        pvec=pvec, bi=stack("bi"),
        num_layers=len(params), hidden=H, intermediate=I, num_heads=num_heads,
    )


def _vmem_estimate(bt, S, H, I, num_heads):
    """Rough per-grid-step VMEM footprint (bytes) used to size the batch tile."""
    del num_heads
    w_bf16 = 3 * H * H + H * H + H * I + I * H          # wqkv, wo, wi, w2 (elements)
    p_f32 = 3 * H + 6 * H + I                           # bqkv, pvec, bi   (elements)
    weights = 2 * (2 * w_bf16 + 4 * p_f32)              # double-buffered layer stream
    act = 4 * bt * S * H                                # h_scratch (f32)
    act += 4 * bt * S * 3 * H + 2 * bt * S * 3 * H      # qkv f32 + bf16 copy
    act += 4 * bt * S * H * 4                           # ctx / attn / h1 / out temps
    act += 4 * bt * S * I + 2 * bt * S * I              # FFN intermediate f32 + bf16
    act += 4 * S * S * 3                                # per-head scores/probs live set
    io = 2 * 4 * bt * S * H * 2                         # double-buffered x + out blocks
    return weights + act + io + (8 << 20)               # compiler scratch headroom


def uniter_encoder(input_, attention_mask, prepared, output_all_encoded_layers=True,
                   batch_tile=None, output_dtype=jnp.float32):
    """Pallas implementation of UniterEncoder.forward (inference / eval mode).

    input_:         (B, S, H) float32 hidden states
    attention_mask: (B, 1, 1, S) additive float32 mask (0 keep / -10000 masked)
    prepared:       output of prepare_params()
    """
    B, S, H = input_.shape
    L = prepared["num_layers"]
    I = prepared["intermediate"]
    num_heads = prepared["num_heads"]
    assert H == prepared["hidden"] and H % num_heads == 0

    try:
        vmem_cap = int(pltpu.get_tpu_info().vmem_capacity_bytes)
    except Exception:
        vmem_cap = 64 << 20                              # conservative fallback
    budget = vmem_cap - (12 << 20)                       # leave compiler headroom

    if batch_tile is None:
        # Largest batch tile that fits VMEM: weights stream once per TILE per layer.
        batch_tile = 1
        for bt in range(B, 0, -1):
            if B % bt == 0 and _vmem_estimate(bt, S, H, I, num_heads) <= budget:
                batch_tile = bt
                break
    assert B % batch_tile == 0
    Bt = batch_tile
    nb = B // Bt

    vmem_limit = int(min(max(_vmem_estimate(Bt, S, H, I, num_heads), 32 << 20), budget))

    x = input_.astype(jnp.float32).reshape(B * S, H)
    mask = attention_mask.reshape(B, 1, S).astype(jnp.float32)

    def batch_spec(shape):   # activation blocks indexed by the batch-tile grid axis
        return pl.BlockSpec(shape, lambda b, l: (b,) + (0,) * (len(shape) - 1))

    def layer_spec(shape):   # stacked per-layer weights streamed along the layer axis
        return pl.BlockSpec((None,) + shape, lambda b, l: (l, 0, 0))

    in_specs = [
        batch_spec((Bt * S, H)),                 # hidden states (flattened batch tile)
        batch_spec((Bt, 1, S)),                  # additive attention mask
        layer_spec((H, 3 * H)),                  # fused Wqkv (scale folded into Wq)
        layer_spec((1, 3 * H)),                  # fused bqkv
        layer_spec((H, H)),                      # Wo
        layer_spec((H, I)),                      # Wi
        layer_spec((I, H)),                      # W2
        layer_spec((6, H)),                      # packed [bo, g1, be1, b2, g2, be2]
        layer_spec((1, I)),                      # bi
    ]

    if output_all_encoded_layers:
        out_shape = jax.ShapeDtypeStruct((L, B * S, H), output_dtype)
        out_specs = pl.BlockSpec((None, Bt * S, H), lambda b, l: (l, b, 0))
    else:
        # Output block stays VMEM-resident across the layer axis; only the last
        # layer's value is written (pl.when in the kernel) and DMA'd back once.
        out_shape = jax.ShapeDtypeStruct((B * S, H), output_dtype)
        out_specs = pl.BlockSpec((Bt * S, H), lambda b, l: (b, 0))

    out = pl.pallas_call(
        functools.partial(
            bert_stack_kernel, num_heads=num_heads, batch_tile=Bt, seq_len=S,
            write_every_layer=output_all_encoded_layers),
        out_shape=out_shape,
        grid=(nb, L),
        in_specs=in_specs,
        out_specs=out_specs,
        scratch_shapes=[pltpu.VMEM((Bt * S, H), jnp.float32)],
        compiler_params=pltpu.CompilerParams(
            dimension_semantics=("parallel", "arbitrary"),
            vmem_limit_bytes=vmem_limit),
    )(
        x, mask,
        prepared["wqkv"], prepared["bqkv"], prepared["wo"],
        prepared["wi"], prepared["w2"], prepared["pvec"], prepared["bi"],
    )

    if output_all_encoded_layers:
        out = out.reshape(L, B, S, H)
        return [out[i] for i in range(L)]
    return [out.reshape(B, S, H)]


def init_params(key, num_layers, hidden, intermediate):
    """Deterministic BERT-style init: N(0, 0.02) weights, zero biases, unit LN gamma."""
    params = []
    for _ in range(num_layers):
        key, *ks = jax.random.split(key, 7)

        def w(k, shape):
            return jax.random.normal(k, shape, jnp.float32) * 0.02

        lp = dict(
            wq=w(ks[0], (hidden, hidden)),       bq=jnp.zeros((1, hidden), jnp.float32),
            wk=w(ks[1], (hidden, hidden)),       bk=jnp.zeros((1, hidden), jnp.float32),
            wv=w(ks[2], (hidden, hidden)),       bv=jnp.zeros((1, hidden), jnp.float32),
            wo=w(ks[3], (hidden, hidden)),       bo=jnp.zeros((1, hidden), jnp.float32),
            g1=jnp.ones((1, hidden), jnp.float32), be1=jnp.zeros((1, hidden), jnp.float32),
            wi=w(ks[4], (hidden, intermediate)), bi=jnp.zeros((1, intermediate), jnp.float32),
            w2=w(ks[5], (intermediate, hidden)), b2=jnp.zeros((1, hidden), jnp.float32),
            g2=jnp.ones((1, hidden), jnp.float32), be2=jnp.zeros((1, hidden), jnp.float32),
        )
        params.append(lp)
    return params


def _reference(x, mask_b1s, params, num_heads):
    """Pure-JAX f32 reference of the same forward pass (same tanh GELU)."""
    def ln(t, g, b):
        mu = t.mean(-1, keepdims=True)
        var = ((t - mu) ** 2).mean(-1, keepdims=True)
        return (t - mu) / jnp.sqrt(var + LN_EPS) * g + b

    B, S, H = x.shape
    d = H // num_heads
    c = math.sqrt(2.0 / math.pi)
    h = x
    outs = []
    for p in params:
        q = h @ p["wq"] + p["bq"]
        k = h @ p["wk"] + p["bk"]
        v = h @ p["wv"] + p["bv"]
        qh = q.reshape(B, S, num_heads, d).transpose(0, 2, 1, 3)
        kh = k.reshape(B, S, num_heads, d).transpose(0, 2, 1, 3)
        vh = v.reshape(B, S, num_heads, d).transpose(0, 2, 1, 3)
        s = jnp.einsum('bhqd,bhkd->bhqk', qh, kh) / math.sqrt(d) + mask_b1s[:, None, :, :]
        pr = jax.nn.softmax(s, axis=-1)
        ctx = jnp.einsum('bhqk,bhkd->bhqd', pr, vh).transpose(0, 2, 1, 3).reshape(B, S, H)
        attn = ctx @ p["wo"] + p["bo"]
        h1 = ln(attn + h, p["g1"], p["be1"])
        inter = h1 @ p["wi"] + p["bi"]
        inter = 0.5 * inter * (1.0 + jnp.tanh(c * (inter + 0.044715 * inter ** 3)))
        ffn = inter @ p["w2"] + p["b2"]
        h = ln(ffn + h1, p["g2"], p["be2"])
        outs.append(h)
    return outs


if __name__ == "__main__":
    B, S, H, I, L = 2, 8, 32, 64, 2   # batch, seq, hidden, intermediate, num_hidden_layers
    NUM_HEADS = 4                     # UNITER/BERT-base would use 12 (H=768)

    key = jax.random.PRNGKey(0)
    k_x, k_p = jax.random.split(key, 2)

    x = jax.random.normal(k_x, (B, S, H), jnp.float32)

    # Binary attention mask -> UNITER-style extended additive mask (B, 1, 1, S).
    valid = jnp.ones((B, S), jnp.float32).at[1, -2:].set(0.0)  # mask last 2 tokens of batch 1
    attention_mask = ((1.0 - valid) * -10000.0).reshape(B, 1, 1, S)

    params = init_params(k_p, L, H, I)
    prepared = prepare_params(params, NUM_HEADS)   # one-time packing / scale folding

    # All encoded layers (matches UniterEncoder default behaviour).
    outs = uniter_encoder(x, attention_mask, prepared, output_all_encoded_layers=True)
    for o in outs:
        jax.block_until_ready(o)
    assert len(outs) == L and outs[-1].shape == (B, S, H)

    # Last-layer-only path (VMEM-resident output block, single writeback).
    last = uniter_encoder(x, attention_mask, prepared, output_all_encoded_layers=False)
    jax.block_until_ready(last[0])
    assert last[0].shape == (B, S, H)

    # Sanity check against a pure-JAX f32 reference (bf16 MXU -> loose tolerance).
    refs = _reference(x, attention_mask.reshape(B, 1, S), params, NUM_HEADS)
    max_err = max(float(jnp.max(jnp.abs(o - r))) for o, r in zip(outs, refs))
    max_err_last = float(jnp.max(jnp.abs(last[0] - refs[-1])))
    assert max_err < 5e-2, f"mismatch vs reference: {max_err}"
    assert max_err_last < 5e-2, f"last-layer mismatch vs reference: {max_err_last}"

    print("KERNEL_OK")
</pallas_src>

<mosaic_0001>
module attributes {stable_mosaic.version = 11 : i64} {
  func.func @bert_stack_kernel(%arg0: i32, %arg1: i32, %arg2: memref<16x32xf32, #tpu.memory_space<vmem>>, %arg3: memref<2x1x8xf32, #tpu.memory_space<vmem>>, %arg4: memref<1x32x96xbf16, #tpu.memory_space<vmem>>, %arg5: memref<1x1x96xf32, #tpu.memory_space<vmem>>, %arg6: memref<1x32x32xbf16, #tpu.memory_space<vmem>>, %arg7: memref<1x32x64xbf16, #tpu.memory_space<vmem>>, %arg8: memref<1x64x32xbf16, #tpu.memory_space<vmem>>, %arg9: memref<1x6x32xf32, #tpu.memory_space<vmem>>, %arg10: memref<1x1x64xf32, #tpu.memory_space<vmem>>, %arg11: memref<1x16x32xf32, #tpu.memory_space<vmem>>, %arg12: memref<16x32xf32, #tpu.memory_space<vmem>>) attributes {dimension_semantics = [#tpu.dimension_semantics<parallel>, #tpu.dimension_semantics<arbitrary>], iteration_bounds = array<i64: 1, 2>, scalar_prefetch = 0 : i64, scratch_operands = 1 : i64, tpu.core_type = #tpu.core_type<tc>, window_params = [{transform_indices = @transform_0, window_bounds = array<i64: 16, 32>}, {transform_indices = @transform_1, window_bounds = array<i64: 2, 1, 8>}, {transform_indices = @transform_2, window_bounds = array<i64: 1, 32, 96>}, {transform_indices = @transform_3, window_bounds = array<i64: 1, 1, 96>}, {transform_indices = @transform_4, window_bounds = array<i64: 1, 32, 32>}, {transform_indices = @transform_5, window_bounds = array<i64: 1, 32, 64>}, {transform_indices = @transform_6, window_bounds = array<i64: 1, 64, 32>}, {transform_indices = @transform_7, window_bounds = array<i64: 1, 6, 32>}, {transform_indices = @transform_8, window_bounds = array<i64: 1, 1, 64>}, {transform_indices = @transform_9, window_bounds = array<i64: 1, 16, 32>}]} {
    %c0_i32 = arith.constant 0 : i32
    %0 = arith.cmpi eq, %arg1, %c0_i32 : i32
    %1 = arith.extui %0 : i1 to i32
    %c0_i32_0 = arith.constant 0 : i32
    %2 = arith.cmpi ne, %1, %c0_i32_0 : i32
    scf.if %2 {
      %c0_80 = arith.constant 0 : index
      %c0_81 = arith.constant 0 : index
      %252 = vector.load %arg2[%c0_80, %c0_81] : memref<16x32xf32, #tpu.memory_space<vmem>>, vector<16x32xf32>
      %c0_82 = arith.constant 0 : index
      %c0_83 = arith.constant 0 : index
      %253 = vector.load %arg12[%c0_82, %c0_83] : memref<16x32xf32, #tpu.memory_space<vmem>>, vector<16x32xf32>
      tpu.vector_store %arg12[%c0_82, %c0_83], %252 {strides = array<i32>} : memref<16x32xf32, #tpu.memory_space<vmem>>, vector<16x32xf32>,
    } else {
    }
    %c0 = arith.constant 0 : index
    %c0_1 = arith.constant 0 : index
    %3 = vector.load %arg12[%c0, %c0_1] : memref<16x32xf32, #tpu.memory_space<vmem>>, vector<16x32xf32>
    %c0_2 = arith.constant 0 : index
    %c0_3 = arith.constant 0 : index
    %c0_4 = arith.constant 0 : index
    %4 = vector.load %arg9[%c0_2, %c0_3, %c0_4] : memref<1x6x32xf32, #tpu.memory_space<vmem>>, vector<1x6x32xf32>
    %5 = vector.shape_cast %4 : vector<1x6x32xf32> to vector<6x32xf32>
    %6 = vector.extract_strided_slice %5 {offsets = [0, 0], sizes = [1, 32], strides = [1, 1]} : vector<6x32xf32> to vector<1x32xf32>
    %7 = vector.extract_strided_slice %5 {offsets = [1, 0], sizes = [1, 32], strides = [1, 1]} : vector<6x32xf32> to vector<1x32xf32>
    %8 = vector.extract_strided_slice %5 {offsets = [2, 0], sizes = [1, 32], strides = [1, 1]} : vector<6x32xf32> to vector<1x32xf32>
    %9 = vector.extract_strided_slice %5 {offsets = [3, 0], sizes = [1, 32], strides = [1, 1]} : vector<6x32xf32> to vector<1x32xf32>
    %10 = vector.extract_strided_slice %5 {offsets = [4, 0], sizes = [1, 32], strides = [1, 1]} : vector<6x32xf32> to vector<1x32xf32>
    %11 = vector.extract_strided_slice %5 {offsets = [5, 0], sizes = [1, 32], strides = [1, 1]} : vector<6x32xf32> to vector<1x32xf32>
    %c0_5 = arith.constant 0 : index
    %c0_6 = arith.constant 0 : index
    %c0_7 = arith.constant 0 : index
    %12 = vector.load %arg3[%c0_5, %c0_6, %c0_7] : memref<2x1x8xf32, #tpu.memory_space<vmem>>, vector<2x1x8xf32>
    %13 = arith.truncf %3 : vector<16x32xf32> to vector<16x32xbf16>
    %c0_8 = arith.constant 0 : index
    %c0_9 = arith.constant 0 : index
    %c0_10 = arith.constant 0 : index
    %14 = vector.load %arg4[%c0_8, %c0_9, %c0_10] : memref<1x32x96xbf16, #tpu.memory_space<vmem>>, vector<1x32x96xbf16>
    %15 = vector.shape_cast %14 : vector<1x32x96xbf16> to vector<32x96xbf16>
    %cst = arith.constant dense<0.000000e+00> : vector<16x96xf32>
    %16 = tpu.matmul %13, %15, %cst {dimension_numbers = #tpu.dot_dimension_numbers<[1], [0], [0], [1], [0, 0, 1, 1], [], []>} : vector<16x32xbf16>, vector<32x96xbf16>, vector<16x96xf32> -> vector<16x96xf32>
    %c0_11 = arith.constant 0 : index
    %c0_12 = arith.constant 0 : index
    %c0_13 = arith.constant 0 : index
    %17 = vector.load %arg5[%c0_11, %c0_12, %c0_13] : memref<1x1x96xf32, #tpu.memory_space<vmem>>, vector<1x1x96xf32>
    %18 = vector.shape_cast %17 : vector<1x1x96xf32> to vector<1x96xf32>
    %19 = vector.broadcast %18 : vector<1x96xf32> to vector<16x96xf32>
    %20 = arith.addf %16, %19 : vector<16x96xf32>
    %21 = arith.truncf %20 : vector<16x96xf32> to vector<16x96xbf16>
    %22 = vector.extract_strided_slice %12 {offsets = [0, 0, 0], sizes = [1, 1, 8], strides = [1, 1, 1]} : vector<2x1x8xf32> to vector<1x1x8xf32>
    %23 = vector.shape_cast %22 : vector<1x1x8xf32> to vector<1x8xf32>
    %24 = vector.extract_strided_slice %21 {offsets = [0, 0], sizes = [8, 8], strides = [1, 1]} : vector<16x96xbf16> to vector<8x8xbf16>
    %25 = vector.extract_strided_slice %21 {offsets = [0, 32], sizes = [8, 8], strides = [1, 1]} : vector<16x96xbf16> to vector<8x8xbf16>
    %26 = vector.extract_strided_slice %21 {offsets = [0, 64], sizes = [8, 8], strides = [1, 1]} : vector<16x96xbf16> to vector<8x8xbf16>
    "tpu.trace_start"() <{level = 10 : i32, message = "qd,kd->qk"}> : () -> ()
    %cst_14 = arith.constant dense<0.000000e+00> : vector<8x8xf32>
    %27 = tpu.matmul %24, %25, %cst_14 {dimension_numbers = #tpu.dot_dimension_numbers<[1], [1], [0], [0], [0, 0, 1, 0], [], []>} : vector<8x8xbf16>, vector<8x8xbf16>, vector<8x8xf32> -> vector<8x8xf32>
    "tpu.trace_stop"() : () -> ()
    %28 = vector.broadcast %23 : vector<1x8xf32> to vector<8x8xf32>
    %29 = arith.addf %27, %28 : vector<8x8xf32>
    %cst_15 = arith.constant dense<0xFF800000> : vector<8xf32>
    %30 = vector.multi_reduction <maximumf>, %29, %cst_15 [1] : vector<8x8xf32> to vector<8xf32>
    %31 = vector.shape_cast %30 : vector<8xf32> to vector<8x1xf32>
    %32 = vector.broadcast %31 : vector<8x1xf32> to vector<8x8xf32>
    %33 = arith.subf %29, %32 : vector<8x8xf32>
    %34 = math.exp %33 : vector<8x8xf32>
    %cst_16 = arith.constant dense<0.000000e+00> : vector<8xf32>
    %35 = vector.multi_reduction <add>, %34, %cst_16 [1] : vector<8x8xf32> to vector<8xf32>
    %36 = vector.shape_cast %35 : vector<8xf32> to vector<8x1xf32>
    %37 = tpu.reciprocal %36 {approx = true} : vector<8x1xf32> -> vector<8x1xf32>
    %38 = vector.broadcast %37 : vector<8x1xf32> to vector<8x8xf32>
    %39 = arith.mulf %34, %38 : vector<8x8xf32>
    %40 = arith.truncf %39 : vector<8x8xf32> to vector<8x8xbf16>
    %cst_17 = arith.constant dense<0.000000e+00> : vector<8x8xf32>
    %41 = tpu.matmul %40, %26, %cst_17 {dimension_numbers = #tpu.dot_dimension_numbers<[1], [0], [0], [1], [0, 0, 1, 1], [], []>} : vector<8x8xbf16>, vector<8x8xbf16>, vector<8x8xf32> -> vector<8x8xf32>
    %42 = vector.extract_strided_slice %21 {offsets = [0, 8], sizes = [8, 8], strides = [1, 1]} : vector<16x96xbf16> to vector<8x8xbf16>
    %43 = vector.extract_strided_slice %21 {offsets = [0, 40], sizes = [8, 8], strides = [1, 1]} : vector<16x96xbf16> to vector<8x8xbf16>
    %44 = vector.extract_strided_slice %21 {offsets = [0, 72], sizes = [8, 8], strides = [1, 1]} : vector<16x96xbf16> to vector<8x8xbf16>
    "tpu.trace_start"() <{level = 10 : i32, message = "qd,kd->qk"}> : () -> ()
    %cst_18 = arith.constant dense<0.000000e+00> : vector<8x8xf32>
    %45 = tpu.matmul %42, %43, %cst_18 {dimension_numbers = #tpu.dot_dimension_numbers<[1], [1], [0], [0], [0, 0, 1, 0], [], []>} : vector<8x8xbf16>, vector<8x8xbf16>, vector<8x8xf32> -> vector<8x8xf32>
    "tpu.trace_stop"() : () -> ()
    %46 = vector.broadcast %23 : vector<1x8xf32> to vector<8x8xf32>
    %47 = arith.addf %45, %46 : vector<8x8xf32>
    %cst_19 = arith.constant dense<0xFF800000> : vector<8xf32>
    %48 = vector.multi_reduction <maximumf>, %47, %cst_19 [1] : vector<8x8xf32> to vector<8xf32>
    %49 = vector.shape_cast %48 : vector<8xf32> to vector<8x1xf32>
    %50 = vector.broadcast %49 : vector<8x1xf32> to vector<8x8xf32>
    %51 = arith.subf %47, %50 : vector<8x8xf32>
    %52 = math.exp %51 : vector<8x8xf32>
    %cst_20 = arith.constant dense<0.000000e+00> : vector<8xf32>
    %53 = vector.multi_reduction <add>, %52, %cst_20 [1] : vector<8x8xf32> to vector<8xf32>
    %54 = vector.shape_cast %53 : vector<8xf32> to vector<8x1xf32>
    %55 = tpu.reciprocal %54 {approx = true} : vector<8x1xf32> -> vector<8x1xf32>
    %56 = vector.broadcast %55 : vector<8x1xf32> to vector<8x8xf32>
    %57 = arith.mulf %52, %56 : vector<8x8xf32>
    %58 = arith.truncf %57 : vector<8x8xf32> to vector<8x8xbf16>
    %cst_21 = arith.constant dense<0.000000e+00> : vector<8x8xf32>
    %59 = tpu.matmul %58, %44, %cst_21 {dimension_numbers = #tpu.dot_dimension_numbers<[1], [0], [0], [1], [0, 0, 1, 1], [], []>} : vector<8x8xbf16>, vector<8x8xbf16>, vector<8x8xf32> -> vector<8x8xf32>
    %60 = vector.extract_strided_slice %21 {offsets = [0, 16], sizes = [8, 8], strides = [1, 1]} : vector<16x96xbf16> to vector<8x8xbf16>
    %61 = vector.extract_strided_slice %21 {offsets = [0, 48], sizes = [8, 8], strides = [1, 1]} : vector<16x96xbf16> to vector<8x8xbf16>
    %62 = vector.extract_strided_slice %21 {offsets = [0, 80], sizes = [8, 8], strides = [1, 1]} : vector<16x96xbf16> to vector<8x8xbf16>
    "tpu.trace_start"() <{level = 10 : i32, message = "qd,kd->qk"}> : () -> ()
    %cst_22 = arith.constant dense<0.000000e+00> : vector<8x8xf32>
    %63 = tpu.matmul %60, %61, %cst_22 {dimension_numbers = #tpu.dot_dimension_numbers<[1], [1], [0], [0], [0, 0, 1, 0], [], []>} : vector<8x8xbf16>, vector<8x8xbf16>, vector<8x8xf32> -> vector<8x8xf32>
    "tpu.trace_stop"() : () -> ()
    %64 = vector.broadcast %23 : vector<1x8xf32> to vector<8x8xf32>
    %65 = arith.addf %63, %64 : vector<8x8xf32>
    %cst_23 = arith.constant dense<0xFF800000> : vector<8xf32>
    %66 = vector.multi_reduction <maximumf>, %65, %cst_23 [1] : vector<8x8xf32> to vector<8xf32>
    %67 = vector.shape_cast %66 : vector<8xf32> to vector<8x1xf32>
    %68 = vector.broadcast %67 : vector<8x1xf32> to vector<8x8xf32>
    %69 = arith.subf %65, %68 : vector<8x8xf32>
    %70 = math.exp %69 : vector<8x8xf32>
    %cst_24 = arith.constant dense<0.000000e+00> : vector<8xf32>
    %71 = vector.multi_reduction <add>, %70, %cst_24 [1] : vector<8x8xf32> to vector<8xf32>
    %72 = vector.shape_cast %71 : vector<8xf32> to vector<8x1xf32>
    %73 = tpu.reciprocal %72 {approx = true} : vector<8x1xf32> -> vector<8x1xf32>
    %74 = vector.broadcast %73 : vector<8x1xf32> to vector<8x8xf32>
    %75 = arith.mulf %70, %74 : vector<8x8xf32>
    %76 = arith.truncf %75 : vector<8x8xf32> to vector<8x8xbf16>
    %cst_25 = arith.constant dense<0.000000e+00> : vector<8x8xf32>
    %77 = tpu.matmul %76, %62, %cst_25 {dimension_numbers = #tpu.dot_dimension_numbers<[1], [0], [0], [1], [0, 0, 1, 1], [], []>} : vector<8x8xbf16>, vector<8x8xbf16>, vector<8x8xf32> -> vector<8x8xf32>
    %78 = vector.extract_strided_slice %21 {offsets = [0, 24], sizes = [8, 8], strides = [1, 1]} : vector<16x96xbf16> to vector<8x8xbf16>
    %79 = vector.extract_strided_slice %21 {offsets = [0, 56], sizes = [8, 8], strides = [1, 1]} : vector<16x96xbf16> to vector<8x8xbf16>
    %80 = vector.extract_strided_slice %21 {offsets = [0, 88], sizes = [8, 8], strides = [1, 1]} : vector<16x96xbf16> to vector<8x8xbf16>
    "tpu.trace_start"() <{level = 10 : i32, message = "qd,kd->qk"}> : () -> ()
    %cst_26 = arith.constant dense<0.000000e+00> : vector<8x8xf32>
    %81 = tpu.matmul %78, %79, %cst_26 {dimension_numbers = #tpu.dot_dimension_numbers<[1], [1], [0], [0], [0, 0, 1, 0], [], []>} : vector<8x8xbf16>, vector<8x8xbf16>, vector<8x8xf32> -> vector<8x8xf32>
    "tpu.trace_stop"() : () -> ()
    %82 = vector.broadcast %23 : vector<1x8xf32> to vector<8x8xf32>
    %83 = arith.addf %81, %82 : vector<8x8xf32>
    %cst_27 = arith.constant dense<0xFF800000> : vector<8xf32>
    %84 = vector.multi_reduction <maximumf>, %83, %cst_27 [1] : vector<8x8xf32> to vector<8xf32>
    %85 = vector.shape_cast %84 : vector<8xf32> to vector<8x1xf32>
    %86 = vector.broadcast %85 : vector<8x1xf32> to vector<8x8xf32>
    %87 = arith.subf %83, %86 : vector<8x8xf32>
    %88 = math.exp %87 : vector<8x8xf32>
    %cst_28 = arith.constant dense<0.000000e+00> : vector<8xf32>
    %89 = vector.multi_reduction <add>, %88, %cst_28 [1] : vector<8x8xf32> to vector<8xf32>
    %90 = vector.shape_cast %89 : vector<8xf32> to vector<8x1xf32>
    %91 = tpu.reciprocal %90 {approx = true} : vector<8x1xf32> -> vector<8x1xf32>
    %92 = vector.broadcast %91 : vector<8x1xf32> to vector<8x8xf32>
    %93 = arith.mulf %88, %92 : vector<8x8xf32>
    %94 = arith.truncf %93 : vector<8x8xf32> to vector<8x8xbf16>
    %cst_29 = arith.constant dense<0.000000e+00> : vector<8x8xf32>
    %95 = tpu.matmul %94, %80, %cst_29 {dimension_numbers = #tpu.dot_dimension_numbers<[1], [0], [0], [1], [0, 0, 1, 1], [], []>} : vector<8x8xbf16>, vector<8x8xbf16>, vector<8x8xf32> -> vector<8x8xf32>
    %96 = tpu.concatenate %41, %59, %77, %95 in 1 : vector<8x8xf32>, vector<8x8xf32>, vector<8x8xf32>, vector<8x8xf32> -> vector<8x32xf32>
    %97 = vector.extract_strided_slice %12 {offsets = [1, 0, 0], sizes = [1, 1, 8], strides = [1, 1, 1]} : vector<2x1x8xf32> to vector<1x1x8xf32>
    %98 = vector.shape_cast %97 : vector<1x1x8xf32> to vector<1x8xf32>
    %99 = vector.extract_strided_slice %21 {offsets = [8, 0], sizes = [8, 8], strides = [1, 1]} : vector<16x96xbf16> to vector<8x8xbf16>
    %100 = vector.extract_strided_slice %21 {offsets = [8, 32], sizes = [8, 8], strides = [1, 1]} : vector<16x96xbf16> to vector<8x8xbf16>
    %101 = vector.extract_strided_slice %21 {offsets = [8, 64], sizes = [8, 8], strides = [1, 1]} : vector<16x96xbf16> to vector<8x8xbf16>
    "tpu.trace_start"() <{level = 10 : i32, message = "qd,kd->qk"}> : () -> ()
    %cst_30 = arith.constant dense<0.000000e+00> : vector<8x8xf32>
    %102 = tpu.matmul %99, %100, %cst_30 {dimension_numbers = #tpu.dot_dimension_numbers<[1], [1], [0], [0], [0, 0, 1, 0], [], []>} : vector<8x8xbf16>, vector<8x8xbf16>, vector<8x8xf32> -> vector<8x8xf32>
    "tpu.trace_stop"() : () -> ()
    %103 = vector.broadcast %98 : vector<1x8xf32> to vector<8x8xf32>
    %104 = arith.addf %102, %103 : vector<8x8xf32>
    %cst_31 = arith.constant dense<0xFF800000> : vector<8xf32>
    %105 = vector.multi_reduction <maximumf>, %104, %cst_31 [1] : vector<8x8xf32> to vector<8xf32>
    %106 = vector.shape_cast %105 : vector<8xf32> to vector<8x1xf32>
    %107 = vector.broadcast %106 : vector<8x1xf32> to vector<8x8xf32>
    %108 = arith.subf %104, %107 : vector<8x8xf32>
    %109 = math.exp %108 : vector<8x8xf32>
    %cst_32 = arith.constant dense<0.000000e+00> : vector<8xf32>
    %110 = vector.multi_reduction <add>, %109, %cst_32 [1] : vector<8x8xf32> to vector<8xf32>
    %111 = vector.shape_cast %110 : vector<8xf32> to vector<8x1xf32>
    %112 = tpu.reciprocal %111 {approx = true} : vector<8x1xf32> -> vector<8x1xf32>
    %113 = vector.broadcast %112 : vector<8x1xf32> to vector<8x8xf32>
    %114 = arith.mulf %109, %113 : vector<8x8xf32>
    %115 = arith.truncf %114 : vector<8x8xf32> to vector<8x8xbf16>
    %cst_33 = arith.constant dense<0.000000e+00> : vector<8x8xf32>
    %116 = tpu.matmul %115, %101, %cst_33 {dimension_numbers = #tpu.dot_dimension_numbers<[1], [0], [0], [1], [0, 0, 1, 1], [], []>} : vector<8x8xbf16>, vector<8x8xbf16>, vector<8x8xf32> -> vector<8x8xf32>
    %117 = vector.extract_strided_slice %21 {offsets = [8, 8], sizes = [8, 8], strides = [1, 1]} : vector<16x96xbf16> to vector<8x8xbf16>
    %118 = vector.extract_strided_slice %21 {offsets = [8, 40], sizes = [8, 8], strides = [1, 1]} : vector<16x96xbf16> to vector<8x8xbf16>
    %119 = vector.extract_strided_slice %21 {offsets = [8, 72], sizes = [8, 8], strides = [1, 1]} : vector<16x96xbf16> to vector<8x8xbf16>
    "tpu.trace_start"() <{level = 10 : i32, message = "qd,kd->qk"}> : () -> ()
    %cst_34 = arith.constant dense<0.000000e+00> : vector<8x8xf32>
    %120 = tpu.matmul %117, %118, %cst_34 {dimension_numbers = #tpu.dot_dimension_numbers<[1], [1], [0], [0], [0, 0, 1, 0], [], []>} : vector<8x8xbf16>, vector<8x8xbf16>, vector<8x8xf32> -> vector<8x8xf32>
    "tpu.trace_stop"() : () -> ()
    %121 = vector.broadcast %98 : vector<1x8xf32> to vector<8x8xf32>
    %122 = arith.addf %120, %121 : vector<8x8xf32>
    %cst_35 = arith.constant dense<0xFF800000> : vector<8xf32>
    %123 = vector.multi_reduction <maximumf>, %122, %cst_35 [1] : vector<8x8xf32> to vector<8xf32>
    %124 = vector.shape_cast %123 : vector<8xf32> to vector<8x1xf32>
    %125 = vector.broadcast %124 : vector<8x1xf32> to vector<8x8xf32>
    %126 = arith.subf %122, %125 : vector<8x8xf32>
    %127 = math.exp %126 : vector<8x8xf32>
    %cst_36 = arith.constant dense<0.000000e+00> : vector<8xf32>
    %128 = vector.multi_reduction <add>, %127, %cst_36 [1] : vector<8x8xf32> to vector<8xf32>
    %129 = vector.shape_cast %128 : vector<8xf32> to vector<8x1xf32>
    %130 = tpu.reciprocal %129 {approx = true} : vector<8x1xf32> -> vector<8x1xf32>
    %131 = vector.broadcast %130 : vector<8x1xf32> to vector<8x8xf32>
    %132 = arith.mulf %127, %131 : vector<8x8xf32>
    %133 = arith.truncf %132 : vector<8x8xf32> to vector<8x8xbf16>
    %cst_37 = arith.constant dense<0.000000e+00> : vector<8x8xf32>
    %134 = tpu.matmul %133, %119, %cst_37 {dimension_numbers = #tpu.dot_dimension_numbers<[1], [0], [0], [1], [0, 0, 1, 1], [], []>} : vector<8x8xbf16>, vector<8x8xbf16>, vector<8x8xf32> -> vector<8x8xf32>
    %135 = vector.extract_strided_slice %21 {offsets = [8, 16], sizes = [8, 8], strides = [1, 1]} : vector<16x96xbf16> to vector<8x8xbf16>
    %136 = vector.extract_strided_slice %21 {offsets = [8, 48], sizes = [8, 8], strides = [1, 1]} : vector<16x96xbf16> to vector<8x8xbf16>
    %137 = vector.extract_strided_slice %21 {offsets = [8, 80], sizes = [8, 8], strides = [1, 1]} : vector<16x96xbf16> to vector<8x8xbf16>
    "tpu.trace_start"() <{level = 10 : i32, message = "qd,kd->qk"}> : () -> ()
    %cst_38 = arith.constant dense<0.000000e+00> : vector<8x8xf32>
    %138 = tpu.matmul %135, %136, %cst_38 {dimension_numbers = #tpu.dot_dimension_numbers<[1], [1], [0], [0], [0, 0, 1, 0], [], []>} : vector<8x8xbf16>, vector<8x8xbf16>, vector<8x8xf32> -> vector<8x8xf32>
    "tpu.trace_stop"() : () -> ()
    %139 = vector.broadcast %98 : vector<1x8xf32> to vector<8x8xf32>
    %140 = arith.addf %138, %139 : vector<8x8xf32>
    %cst_39 = arith.constant dense<0xFF800000> : vector<8xf32>
    %141 = vector.multi_reduction <maximumf>, %140, %cst_39 [1] : vector<8x8xf32> to vector<8xf32>
    %142 = vector.shape_cast %141 : vector<8xf32> to vector<8x1xf32>
    %143 = vector.broadcast %142 : vector<8x1xf32> to vector<8x8xf32>
    %144 = arith.subf %140, %143 : vector<8x8xf32>
    %145 = math.exp %144 : vector<8x8xf32>
    %cst_40 = arith.constant dense<0.000000e+00> : vector<8xf32>
    %146 = vector.multi_reduction <add>, %145, %cst_40 [1] : vector<8x8xf32> to vector<8xf32>
    %147 = vector.shape_cast %146 : vector<8xf32> to vector<8x1xf32>
    %148 = tpu.reciprocal %147 {approx = true} : vector<8x1xf32> -> vector<8x1xf32>
    %149 = vector.broadcast %148 : vector<8x1xf32> to vector<8x8xf32>
    %150 = arith.mulf %145, %149 : vector<8x8xf32>
    %151 = arith.truncf %150 : vector<8x8xf32> to vector<8x8xbf16>
    %cst_41 = arith.constant dense<0.000000e+00> : vector<8x8xf32>
    %152 = tpu.matmul %151, %137, %cst_41 {dimension_numbers = #tpu.dot_dimension_numbers<[1], [0], [0], [1], [0, 0, 1, 1], [], []>} : vector<8x8xbf16>, vector<8x8xbf16>, vector<8x8xf32> -> vector<8x8xf32>
    %153 = vector.extract_strided_slice %21 {offsets = [8, 24], sizes = [8, 8], strides = [1, 1]} : vector<16x96xbf16> to vector<8x8xbf16>
    %154 = vector.extract_strided_slice %21 {offsets = [8, 56], sizes = [8, 8], strides = [1, 1]} : vector<16x96xbf16> to vector<8x8xbf16>
    %155 = vector.extract_strided_slice %21 {offsets = [8, 88], sizes = [8, 8], strides = [1, 1]} : vector<16x96xbf16> to vector<8x8xbf16>
    "tpu.trace_start"() <{level = 10 : i32, message = "qd,kd->qk"}> : () -> ()
    %cst_42 = arith.constant dense<0.000000e+00> : vector<8x8xf32>
    %156 = tpu.matmul %153, %154, %cst_42 {dimension_numbers = #tpu.dot_dimension_numbers<[1], [1], [0], [0], [0, 0, 1, 0], [], []>} : vector<8x8xbf16>, vector<8x8xbf16>, vector<8x8xf32> -> vector<8x8xf32>
    "tpu.trace_stop"() : () -> ()
    %157 = vector.broadcast %98 : vector<1x8xf32> to vector<8x8xf32>
    %158 = arith.addf %156, %157 : vector<8x8xf32>
    %cst_43 = arith.constant dense<0xFF800000> : vector<8xf32>
    %159 = vector.multi_reduction <maximumf>, %158, %cst_43 [1] : vector<8x8xf32> to vector<8xf32>
    %160 = vector.shape_cast %159 : vector<8xf32> to vector<8x1xf32>
    %161 = vector.broadcast %160 : vector<8x1xf32> to vector<8x8xf32>
    %162 = arith.subf %158, %161 : vector<8x8xf32>
    %163 = math.exp %162 : vector<8x8xf32>
    %cst_44 = arith.constant dense<0.000000e+00> : vector<8xf32>
    %164 = vector.multi_reduction <add>, %163, %cst_44 [1] : vector<8x8xf32> to vector<8xf32>
    %165 = vector.shape_cast %164 : vector<8xf32> to vector<8x1xf32>
    %166 = tpu.reciprocal %165 {approx = true} : vector<8x1xf32> -> vector<8x1xf32>
    %167 = vector.broadcast %166 : vector<8x1xf32> to vector<8x8xf32>
    %168 = arith.mulf %163, %167 : vector<8x8xf32>
    %169 = arith.truncf %168 : vector<8x8xf32> to vector<8x8xbf16>
    %cst_45 = arith.constant dense<0.000000e+00> : vector<8x8xf32>
    %170 = tpu.matmul %169, %155, %cst_45 {dimension_numbers = #tpu.dot_dimension_numbers<[1], [0], [0], [1], [0, 0, 1, 1], [], []>} : vector<8x8xbf16>, vector<8x8xbf16>, vector<8x8xf32> -> vector<8x8xf32>
    %171 = tpu.concatenate %116, %134, %152, %170 in 1 : vector<8x8xf32>, vector<8x8xf32>, vector<8x8xf32>, vector<8x8xf32> -> vector<8x32xf32>
    %172 = tpu.concatenate %96, %171 in 0 : vector<8x32xf32>, vector<8x32xf32> -> vector<16x32xf32>
    %173 = arith.truncf %172 : vector<16x32xf32> to vector<16x32xbf16>
    %c0_46 = arith.constant 0 : index
    %c0_47 = arith.constant 0 : index
    %c0_48 = arith.constant 0 : index
    %174 = vector.load %arg6[%c0_46, %c0_47, %c0_48] : memref<1x32x32xbf16, #tpu.memory_space<vmem>>, vector<1x32x32xbf16>
    %175 = vector.shape_cast %174 : vector<1x32x32xbf16> to vector<32x32xbf16>
    %cst_49 = arith.constant dense<0.000000e+00> : vector<16x32xf32>
    %176 = tpu.matmul %173, %175, %cst_49 {dimension_numbers = #tpu.dot_dimension_numbers<[1], [0], [0], [1], [0, 0, 1, 1], [], []>} : vector<16x32xbf16>, vector<32x32xbf16>, vector<16x32xf32> -> vector<16x32xf32>
    %177 = vector.broadcast %6 : vector<1x32xf32> to vector<16x32xf32>
    %178 = arith.addf %176, %177 : vector<16x32xf32>
    %179 = arith.addf %178, %3 : vector<16x32xf32>
    %cst_50 = arith.constant dense<0.000000e+00> : vector<16xf32>
    %180 = vector.multi_reduction <add>, %179, %cst_50 [1] : vector<16x32xf32> to vector<16xf32>
    %181 = vector.shape_cast %180 : vector<16xf32> to vector<16x1xf32>
    %cst_51 = arith.constant 3.200000e+01 : f32
    %182 = vector.broadcast %cst_51 : f32 to vector<16x1xf32>
    %183 = arith.divf %181, %182 : vector<16x1xf32>
    %184 = vector.broadcast %183 : vector<16x1xf32> to vector<16x32xf32>
    %185 = arith.subf %179, %184 : vector<16x32xf32>
    %186 = arith.mulf %185, %185 : vector<16x32xf32>
    %cst_52 = arith.constant dense<0.000000e+00> : vector<16xf32>
    %187 = vector.multi_reduction <add>, %186, %cst_52 [1] : vector<16x32xf32> to vector<16xf32>
    %188 = vector.shape_cast %187 : vector<16xf32> to vector<16x1xf32>
    %cst_53 = arith.constant 3.200000e+01 : f32
    %189 = vector.broadcast %cst_53 : f32 to vector<16x1xf32>
    %190 = arith.divf %188, %189 : vector<16x1xf32>
    %cst_54 = arith.constant 9.99999996E-13 : f32
    %191 = vector.broadcast %cst_54 : f32 to vector<16x1xf32>
    %192 = arith.addf %190, %191 : vector<16x1xf32>
    %193 = math.rsqrt %192 : vector<16x1xf32>
    %194 = vector.broadcast %193 : vector<16x1xf32> to vector<16x32xf32>
    %195 = arith.mulf %185, %194 : vector<16x32xf32>
    %196 = vector.broadcast %7 : vector<1x32xf32> to vector<16x32xf32>
    %197 = arith.mulf %195, %196 : vector<16x32xf32>
    %198 = vector.broadcast %8 : vector<1x32xf32> to vector<16x32xf32>
    %199 = arith.addf %197, %198 : vector<16x32xf32>
    %200 = arith.truncf %199 : vector<16x32xf32> to vector<16x32xbf16>
    %c0_55 = arith.constant 0 : index
    %c0_56 = arith.constant 0 : index
    %c0_57 = arith.constant 0 : index
    %201 = vector.load %arg7[%c0_55, %c0_56, %c0_57] : memref<1x32x64xbf16, #tpu.memory_space<vmem>>, vector<1x32x64xbf16>
    %202 = vector.shape_cast %201 : vector<1x32x64xbf16> to vector<32x64xbf16>
    %cst_58 = arith.constant dense<0.000000e+00> : vector<16x64xf32>
    %203 = tpu.matmul %200, %202, %cst_58 {dimension_numbers = #tpu.dot_dimension_numbers<[1], [0], [0], [1], [0, 0, 1, 1], [], []>} : vector<16x32xbf16>, vector<32x64xbf16>, vector<16x64xf32> -> vector<16x64xf32>
    %c0_59 = arith.constant 0 : index
    %c0_60 = arith.constant 0 : index
    %c0_61 = arith.constant 0 : index
    %204 = vector.load %arg10[%c0_59, %c0_60, %c0_61] : memref<1x1x64xf32, #tpu.memory_space<vmem>>, vector<1x1x64xf32>
    %205 = vector.shape_cast %204 : vector<1x1x64xf32> to vector<1x64xf32>
    %206 = vector.broadcast %205 : vector<1x64xf32> to vector<16x64xf32>
    %207 = arith.addf %203, %206 : vector<16x64xf32>
    %cst_62 = arith.constant 5.000000e-01 : f32
    %208 = vector.broadcast %cst_62 : f32 to vector<16x64xf32>
    %209 = arith.mulf %208, %207 : vector<16x64xf32>
    %cst_63 = arith.constant 4.471500e-02 : f32
    %210 = vector.broadcast %cst_63 : f32 to vector<16x64xf32>
    %211 = arith.mulf %210, %207 : vector<16x64xf32>
    %212 = arith.mulf %211, %207 : vector<16x64xf32>
    %213 = arith.mulf %212, %207 : vector<16x64xf32>
    %214 = arith.addf %207, %213 : vector<16x64xf32>
    %cst_64 = arith.constant 0.797884583 : f32
    %215 = vector.broadcast %cst_64 : f32 to vector<16x64xf32>
    %216 = arith.mulf %215, %214 : vector<16x64xf32>
    %217 = math.tanh %216 : vector<16x64xf32>
    %cst_65 = arith.constant 1.000000e+00 : f32
    %218 = vector.broadcast %cst_65 : f32 to vector<16x64xf32>
    %219 = arith.addf %218, %217 : vector<16x64xf32>
    %220 = arith.mulf %209, %219 : vector<16x64xf32>
    %221 = arith.truncf %220 : vector<16x64xf32> to vector<16x64xbf16>
    %c0_66 = arith.constant 0 : index
    %c0_67 = arith.constant 0 : index
    %c0_68 = arith.constant 0 : index
    %222 = vector.load %arg8[%c0_66, %c0_67, %c0_68] : memref<1x64x32xbf16, #tpu.memory_space<vmem>>, vector<1x64x32xbf16>
    %223 = vector.shape_cast %222 : vector<1x64x32xbf16> to vector<64x32xbf16>
    %cst_69 = arith.constant dense<0.000000e+00> : vector<16x32xf32>
    %224 = tpu.matmul %221, %223, %cst_69 {dimension_numbers = #tpu.dot_dimension_numbers<[1], [0], [0], [1], [0, 0, 1, 1], [], []>} : vector<16x64xbf16>, vector<64x32xbf16>, vector<16x32xf32> -> vector<16x32xf32>
    %225 = vector.broadcast %9 : vector<1x32xf32> to vector<16x32xf32>
    %226 = arith.addf %224, %225 : vector<16x32xf32>
    %227 = arith.addf %226, %199 : vector<16x32xf32>
    %cst_70 = arith.constant dense<0.000000e+00> : vector<16xf32>
    %228 = vector.multi_reduction <add>, %227, %cst_70 [1] : vector<16x32xf32> to vector<16xf32>
    %229 = vector.shape_cast %228 : vector<16xf32> to vector<16x1xf32>
    %cst_71 = arith.constant 3.200000e+01 : f32
    %230 = vector.broadcast %cst_71 : f32 to vector<16x1xf32>
    %231 = arith.divf %229, %230 : vector<16x1xf32>
    %232 = vector.broadcast %231 : vector<16x1xf32> to vector<16x32xf32>
    %233 = arith.subf %227, %232 : vector<16x32xf32>
    %234 = arith.mulf %233, %233 : vector<16x32xf32>
    %cst_72 = arith.constant dense<0.000000e+00> : vector<16xf32>
    %235 = vector.multi_reduction <add>, %234, %cst_72 [1] : vector<16x32xf32> to vector<16xf32>
    %236 = vector.shape_cast %235 : vector<16xf32> to vector<16x1xf32>
    %cst_73 = arith.constant 3.200000e+01 : f32
    %237 = vector.broadcast %cst_73 : f32 to vector<16x1xf32>
    %238 = arith.divf %236, %237 : vector<16x1xf32>
    %cst_74 = arith.constant 9.99999996E-13 : f32
    %239 = vector.broadcast %cst_74 : f32 to vector<16x1xf32>
    %240 = arith.addf %238, %239 : vector<16x1xf32>
    %241 = math.rsqrt %240 : vector<16x1xf32>
    %242 = vector.broadcast %241 : vector<16x1xf32> to vector<16x32xf32>
    %243 = arith.mulf %233, %242 : vector<16x32xf32>
    %244 = vector.broadcast %10 : vector<1x32xf32> to vector<16x32xf32>
    %245 = arith.mulf %243, %244 : vector<16x32xf32>
    %246 = vector.broadcast %11 : vector<1x32xf32> to vector<16x32xf32>
    %247 = arith.addf %245, %246 : vector<16x32xf32>
    %c0_75 = arith.constant 0 : index
    %c0_76 = arith.constant 0 : index
    %248 = vector.load %arg12[%c0_75, %c0_76] : memref<16x32xf32, #tpu.memory_space<vmem>>, vector<16x32xf32>
    tpu.vector_store %arg12[%c0_75, %c0_76], %247 {strides = array<i32>} : memref<16x32xf32, #tpu.memory_space<vmem>>, vector<16x32xf32>,
    %c0_77 = arith.constant 0 : index
    %c0_78 = arith.constant 0 : index
    %c0_79 = arith.constant 0 : index
    %249 = vector.load %arg11[%c0_77, %c0_78, %c0_79] : memref<1x16x32xf32, #tpu.memory_space<vmem>>, vector<1x16x32xf32>
    %250 = vector.shape_cast %249 : vector<1x16x32xf32> to vector<16x32xf32>
    %251 = vector.shape_cast %247 : vector<16x32xf32> to vector<1x16x32xf32>
    tpu.vector_store %arg11[%c0_77, %c0_78, %c0_79], %251 {strides = array<i32>} : memref<1x16x32xf32, #tpu.memory_space<vmem>>, vector<1x16x32xf32>,
    return
  }
  func.func @transform_0(%arg0: i32, %arg1: i32) -> (i32, i32) {
    %c0_i32 = arith.constant 0 : i32
    %c0_i32_0 = arith.constant 0 : i32
    return %arg0, %c0_i32 : i32, i32
  }
  func.func @transform_1(%arg0: i32, %arg1: i32) -> (i32, i32, i32) {
    %c0_i32 = arith.constant 0 : i32
    %c0_i32_0 = arith.constant 0 : i32
    %c0_i32_1 = arith.constant 0 : i32
    return %arg0, %c0_i32, %c0_i32_0 : i32, i32, i32
  }
  func.func @transform_2(%arg0: i32, %arg1: i32) -> (i32, i32, i32) {
    %c0_i32 = arith.constant 0 : i32
    %c0_i32_0 = arith.constant 0 : i32
    %c0_i32_1 = arith.constant 0 : i32
    return %arg1, %c0_i32, %c0_i32_0 : i32, i32, i32
  }
  func.func @transform_3(%arg0: i32, %arg1: i32) -> (i32, i32, i32) {
    %c0_i32 = arith.constant 0 : i32
    %c0_i32_0 = arith.constant 0 : i32
    %c0_i32_1 = arith.constant 0 : i32
    return %arg1, %c0_i32, %c0_i32_0 : i32, i32, i32
  }
  func.func @transform_4(%arg0: i32, %arg1: i32) -> (i32, i32, i32) {
    %c0_i32 = arith.constant 0 : i32
    %c0_i32_0 = arith.constant 0 : i32
    %c0_i32_1 = arith.constant 0 : i32
    return %arg1, %c0_i32, %c0_i32_0 : i32, i32, i32
  }
  func.func @transform_5(%arg0: i32, %arg1: i32) -> (i32, i32, i32) {
    %c0_i32 = arith.constant 0 : i32
    %c0_i32_0 = arith.constant 0 : i32
    %c0_i32_1 = arith.constant 0 : i32
    return %arg1, %c0_i32, %c0_i32_0 : i32, i32, i32
  }
  func.func @transform_6(%arg0: i32, %arg1: i32) -> (i32, i32, i32) {
    %c0_i32 = arith.constant 0 : i32
    %c0_i32_0 = arith.constant 0 : i32
    %c0_i32_1 = arith.constant 0 : i32
    return %arg1, %c0_i32, %c0_i32_0 : i32, i32, i32
  }
  func.func @transform_7(%arg0: i32, %arg1: i32) -> (i32, i32, i32) {
    %c0_i32 = arith.constant 0 : i32
    %c0_i32_0 = arith.constant 0 : i32
    %c0_i32_1 = arith.constant 0 : i32
    return %arg1, %c0_i32, %c0_i32_0 : i32, i32, i32
  }
  func.func @transform_8(%arg0: i32, %arg1: i32) -> (i32, i32, i32) {
    %c0_i32 = arith.constant 0 : i32
    %c0_i32_0 = arith.constant 0 : i32
    %c0_i32_1 = arith.constant 0 : i32
    return %arg1, %c0_i32, %c0_i32_0 : i32, i32, i32
  }
  func.func @transform_9(%arg0: i32, %arg1: i32) -> (i32, i32, i32) {
    %c0_i32 = arith.constant 0 : i32
    %c0_i32_0 = arith.constant 0 : i32
    return %arg1, %arg0, %c0_i32 : i32, i32, i32
  }
}

</mosaic_0001>

<llo_original>
// kernel: tpu_custom_call.1
$region0: #{tpu_custom_call.1}
  #allocation0 [shape = 'u32[]', space=smem, size = 0x4, offset = 0x4, fixed_abs, tag = 'smem constant byte address 0x4 - core index']
  #allocation1 [shape = 'u32[144,128]{1,0:T(1,128)}', space=vmem, size = 0x12000, scoped, tag = 'internal scratch']
  #allocation2 [shape = 'f32[16,32]{1,0:T(8,128)}', space=vmem, size = 0x2000, scoped, tag = 'scratch operand']
  %s0 = inlined_call_operand.vmem [shape: f32[16,32], index: 0, kind: input, shape index: {}]
  %s1 = inlined_call_operand.vmem [shape: f32[2,1,8], index: 1, kind: input, shape index: {}]
  %s2 = inlined_call_operand.vmem [shape: bf16[2,32,96], index: 2, kind: input, shape index: {}]
  %s3 = inlined_call_operand.hbm [shape: f32[2,1,96], index: 3, kind: input, shape index: {}]
  %s4 = inlined_call_operand.vmem [shape: bf16[2,32,32], index: 4, kind: input, shape index: {}]
  %s5 = inlined_call_operand.vmem [shape: bf16[2,32,64], index: 5, kind: input, shape index: {}]
  %s6 = inlined_call_operand.vmem [shape: bf16[2,64,32], index: 6, kind: input, shape index: {}]
  %s7 = inlined_call_operand.vmem [shape: f32[2,6,32], index: 7, kind: input, shape index: {}]
  %s8 = inlined_call_operand.vmem [shape: f32[2,1,64], index: 8, kind: input, shape index: {}]
  %s9 = inlined_call_operand.hbm [shape: f32[2,16,32], index: 9, kind: output, shape index: {}]
  %s10 = sld [smem:[#allocation0]]
  $region77: #{tpu_custom_call.1} parent=0
    _
  %s12 = ssub.s32 1, %s10
  %s13 = scalar_select 0, %s12, %s10
  $region1: #{tpu_custom_call.1} parent=0
    #allocation3 [shape = 'u8[1024]{0}', space=vmem, size = 0x400, scoped, tag = 'input window, operand 3']
    #allocation4 [shape = 's32[2]{0}', space=sflag, size = 0x8, scoped, tag = 'scoped memory for tpu_custom_call.1']
    #allocation5 [shape = 's32[2]{0}', space=sflag, size = 0x8, scoped, tag = 'scoped memory for tpu_custom_call.1']
    #allocation6 [shape = 'u8[16384]{0}', space=vmem, size = 0x4000, scoped, tag = 'output window, operand 0']
    %14 = vsyncpa [#allocation4], 0
    %s15 = scalar_lea.sflag [#allocation4], 1
    %16 = vsyncpa %s15, 0
    %17 = vsyncpa [#allocation5], 0
    %s18 = scalar_lea.sflag [#allocation5], 1
    %19 = vsyncpa %s18, 0
    loop: start=0, step=1, limit=4
    $region2: #{tpu_custom_call.1} parent=1 // loop_pre_header
      _
    $region3: #{tpu_custom_call.1} parent=1 // loop_header
      %s21 = sphi 0, %s25
      %p22 = scmp.ge.s32.totalorder %s21, 4
      %s28 = sphi 0, %s40
      %s29 = sphi 0, %s36
      %s30 = sphi 0, %s28
      %s31 = sphi 0, %s29
      %s32 = sphi 0, %s30
      %s33 = sphi 0, %s31
      %s43 = sphi 0, %s45
      %s46 = sphi 0, %s43
      %s47 = sphi 0, %s46
      %s63 = sphi 0, %s47
      %s69 = sphi 0, %s71
      %s72 = sphi 0, %s69
      %s73 = sphi 0, %s72
      %s89 = sphi 0, %s73
      %s95 = sphi 0, %s97
      %s98 = sphi 0, %s95
      %s99 = sphi 0, %s98
      %s115 = sphi 0, %s99
      %s121 = sphi 0, %s123
      %s124 = sphi 0, %s121
      %s125 = sphi 0, %s124
      %s141 = sphi 0, %s125
      %s147 = sphi 0, %s149
      %s150 = sphi 0, %s147
      %s151 = sphi 0, %s150
      %s167 = sphi 0, %s151
      %s173 = sphi 0, %s175
      %s176 = sphi 0, %s173
      %s177 = sphi 0, %s176
      %s193 = sphi 0, %s177
      %s199 = sphi 0, %s201
      %s202 = sphi 0, %s199
      %s203 = sphi 0, %s202
      %s219 = sphi 0, %s203
      %s225 = sphi 0, %s227
      %s228 = sphi 0, %s225
      %s229 = sphi 0, %s228
      %s245 = sphi 0, %s229
      %s251 = sphi 0, %s253
      %s254 = sphi 0, %s251
      %s255 = sphi 0, %s254
      %s271 = sphi 0, %s255
      %s279 = sphi 0, %s281
      %s282 = sphi 0, %s279
      %s283 = sphi 0, %s282
      %s299 = sphi 0, %s283
    $region4: #{tpu_custom_call.1} parent=1 // loop_header_branch
      %24 = sbr.rel (%p22) target = $region8
    $region5: #{tpu_custom_call.1} parent=1 // loop_body
      %s26 = ssub.s32 %s21, 1
      %s27 = ssub.s32 %s21, 2
      %s34 = sadd.s32 1, %s29
      %p35 = scmp.ge.s32.totalorder %s34, 2
      %s36 = scalar_select %p35, 0, %s34
      %s37 = sadd.s32 1, %s28
      %s38 = scalar_select %p35, %s37, %s28
      %p39 = scmp.ge.s32.totalorder %s38, 1
      %s40 = scalar_select %p39, 0, %s38
      %s41 = ssub.s32 %s28, %s40
      %p42 = scmp.eq.s32.totalorder %s41, 0
      %s44 = sadd.s32 %s43, 1
      %s45 = scalar_select %p42, %s43, %s44
      %p48 = pneg %p42
      %p49 = scmp.eq.s32.totalorder %s21, 1
      %p50 = por %p48, %p49
      %p51 = scmp.ne.s32.totalorder %s43, %s46
      %p52 = scmp.eq.s32.totalorder %s21, 0
      %p53 = por %p51, %p52
      %p54 = scmp.ne.s32.totalorder %s43, %s46
      %p55 = scmp.eq.s32.totalorder %s26, 1
      %p56 = por %p54, %p55
      %p57 = scmp.ne.s32.totalorder %s46, %s47
      %p58 = scmp.eq.s32.totalorder %s26, 0
      %p59 = por %p57, %p58
      %p60 = scmp.ne.s32.totalorder %s46, %s47
      %p61 = scmp.eq.s32.totalorder %s27, 1
      %p62 = por %p60, %p61
      %p64 = scmp.ne.s32.totalorder %s47, %s63
      %p65 = scmp.eq.s32.totalorder %s27, 0
      %p66 = por %p64, %p65
      %s67 = ssub.s32 %s28, %s40
      %p68 = scmp.eq.s32.totalorder %s67, 0
      %s70 = sadd.s32 %s69, 1
      %s71 = scalar_select %p68, %s69, %s70
      %p74 = pneg %p68
      %p75 = scmp.eq.s32.totalorder %s21, 1
      %p76 = por %p74, %p75
      %p77 = scmp.ne.s32.totalorder %s69, %s72
      %p78 = scmp.eq.s32.totalorder %s21, 0
      %p79 = por %p77, %p78
      %p80 = scmp.ne.s32.totalorder %s69, %s72
      %p81 = scmp.eq.s32.totalorder %s26, 1
      %p82 = por %p80, %p81
      %p83 = scmp.ne.s32.totalorder %s72, %s73
      %p84 = scmp.eq.s32.totalorder %s26, 0
      %p85 = por %p83, %p84
      %p86 = scmp.ne.s32.totalorder %s72, %s73
      %p87 = scmp.eq.s32.totalorder %s27, 1
      %p88 = por %p86, %p87
      %p90 = scmp.ne.s32.totalorder %s73, %s89
      %p91 = scmp.eq.s32.totalorder %s27, 0
      %p92 = por %p90, %p91
      %s93 = ssub.s32 %s29, %s36
      %p94 = scmp.eq.s32.totalorder %s93, 0
      %s96 = sadd.s32 %s95, 1
      %s97 = scalar_select %p94, %s95, %s96
      %p100 = pneg %p94
      %p101 = scmp.eq.s32.totalorder %s21, 1
      %p102 = por %p100, %p101
      %p103 = scmp.ne.s32.totalorder %s95, %s98
      %p104 = scmp.eq.s32.totalorder %s21, 0
      %p105 = por %p103, %p104
      %p106 = scmp.ne.s32.totalorder %s95, %s98
      %p107 = scmp.eq.s32.totalorder %s26, 1
      %p108 = por %p106, %p107
      %p109 = scmp.ne.s32.totalorder %s98, %s99
      %p110 = scmp.eq.s32.totalorder %s26, 0
      %p111 = por %p109, %p110
      %p112 = scmp.ne.s32.totalorder %s98, %s99
      %p113 = scmp.eq.s32.totalorder %s27, 1
      %p114 = por %p112, %p113
      %p116 = scmp.ne.s32.totalorder %s99, %s115
      %p117 = scmp.eq.s32.totalorder %s27, 0
      %p118 = por %p116, %p117
      %s119 = ssub.s32 %s29, %s36
      %p120 = scmp.eq.s32.totalorder %s119, 0
      %s122 = sadd.s32 %s121, 1
      %s123 = scalar_select %p120, %s121, %s122
      %p126 = pneg %p120
      %p127 = scmp.eq.s32.totalorder %s21, 1
      %p128 = por %p126, %p127
      %p129 = scmp.ne.s32.totalorder %s121, %s124
      %p130 = scmp.eq.s32.totalorder %s21, 0
      %p131 = por %p129, %p130
      %p132 = scmp.ne.s32.totalorder %s121, %s124
      %p133 = scmp.eq.s32.totalorder %s26, 1
      %p134 = por %p132, %p133
      %p135 = scmp.ne.s32.totalorder %s124, %s125
      %p136 = scmp.eq.s32.totalorder %s26, 0
      %p137 = por %p135, %p136
      %p138 = scmp.ne.s32.totalorder %s124, %s125
      %p139 = scmp.eq.s32.totalorder %s27, 1
      %p140 = por %p138, %p139
      %p142 = scmp.ne.s32.totalorder %s125, %s141
      %p143 = scmp.eq.s32.totalorder %s27, 0
      %p144 = por %p142, %p143
      %s145 = ssub.s32 %s29, %s36
      %p146 = scmp.eq.s32.totalorder %s145, 0
      %s148 = sadd.s32 %s147, 1
      %s149 = scalar_select %p146, %s147, %s148
      %p152 = pneg %p146
      %p153 = scmp.eq.s32.totalorder %s21, 1
      %p154 = por %p152, %p153
      %p155 = scmp.ne.s32.totalorder %s147, %s150
      %p156 = scmp.eq.s32.totalorder %s21, 0
      %p157 = por %p155, %p156
      %p158 = scmp.ne.s32.totalorder %s147, %s150
      %p159 = scmp.eq.s32.totalorder %s26, 1
      %p160 = por %p158, %p159
      %p161 = scmp.ne.s32.totalorder %s150, %s151
      %p162 = scmp.eq.s32.totalorder %s26, 0
      %p163 = por %p161, %p162
      %p164 = scmp.ne.s32.totalorder %s150, %s151
      %p165 = scmp.eq.s32.totalorder %s27, 1
      %p166 = por %p164, %p165
      %p168 = scmp.ne.s32.totalorder %s151, %s167
      %p169 = scmp.eq.s32.totalorder %s27, 0
      %p170 = por %p168, %p169
      %s171 = ssub.s32 %s29, %s36
      %p172 = scmp.eq.s32.totalorder %s171, 0
      %s174 = sadd.s32 %s173, 1
      %s175 = scalar_select %p172, %s173, %s174
      %p178 = pneg %p172
      %p179 = scmp.eq.s32.totalorder %s21, 1
      %p180 = por %p178, %p179
      %p181 = scmp.ne.s32.totalorder %s173, %s176
      %p182 = scmp.eq.s32.totalorder %s21, 0
      %p183 = por %p181, %p182
      %p184 = scmp.ne.s32.totalorder %s173, %s176
      %p185 = scmp.eq.s32.totalorder %s26, 1
      %p186 = por %p184, %p185
      %p187 = scmp.ne.s32.totalorder %s176, %s177
      %p188 = scmp.eq.s32.totalorder %s26, 0
      %p189 = por %p187, %p188
      %p190 = scmp.ne.s32.totalorder %s176, %s177
      %p191 = scmp.eq.s32.totalorder %s27, 1
      %p192 = por %p190, %p191
      %p194 = scmp.ne.s32.totalorder %s177, %s193
      %p195 = scmp.eq.s32.totalorder %s27, 0
      %p196 = por %p194, %p195
      %s197 = ssub.s32 %s29, %s36
      %p198 = scmp.eq.s32.totalorder %s197, 0
      %s200 = sadd.s32 %s199, 1
      %s201 = scalar_select %p198, %s199, %s200
      %p204 = pneg %p198
      %p205 = scmp.eq.s32.totalorder %s21, 1
      %p206 = por %p204, %p205
      %p207 = scmp.ne.s32.totalorder %s199, %s202
      %p208 = scmp.eq.s32.totalorder %s21, 0
      %p209 = por %p207, %p208
      %p210 = scmp.ne.s32.totalorder %s199, %s202
      %p211 = scmp.eq.s32.totalorder %s26, 1
      %p212 = por %p210, %p211
      %p213 = scmp.ne.s32.totalorder %s202, %s203
      %p214 = scmp.eq.s32.totalorder %s26, 0
      %p215 = por %p213, %p214
      %p216 = scmp.ne.s32.totalorder %s202, %s203
      %p217 = scmp.eq.s32.totalorder %s27, 1
      %p218 = por %p216, %p217
      %p220 = scmp.ne.s32.totalorder %s203, %s219
      %p221 = scmp.eq.s32.totalorder %s27, 0
      %p222 = por %p220, %p221
      %s223 = ssub.s32 %s29, %s36
      %p224 = scmp.eq.s32.totalorder %s223, 0
      %s226 = sadd.s32 %s225, 1
      %s227 = scalar_select %p224, %s225, %s226
      %p230 = pneg %p224
      %p231 = scmp.eq.s32.totalorder %s21, 1
      %p232 = por %p230, %p231
      %p233 = scmp.ne.s32.totalorder %s225, %s228
      %p234 = scmp.eq.s32.totalorder %s21, 0
      %p235 = por %p233, %p234
      %p236 = scmp.ne.s32.totalorder %s225, %s228
      %p237 = scmp.eq.s32.totalorder %s26, 1
      %p238 = por %p236, %p237
      %p239 = scmp.ne.s32.totalorder %s228, %s229
      %p240 = scmp.eq.s32.totalorder %s26, 0
      %p241 = por %p239, %p240
      %p242 = scmp.ne.s32.totalorder %s228, %s229
      %p243 = scmp.eq.s32.totalorder %s27, 1
      %p244 = por %p242, %p243
      %p246 = scmp.ne.s32.totalorder %s229, %s245
      %p247 = scmp.eq.s32.totalorder %s27, 0
      %p248 = por %p246, %p247
      %s249 = ssub.s32 %s29, %s36
      %p250 = scmp.eq.s32.totalorder %s249, 0
      %s252 = sadd.s32 %s251, 1
      %s253 = scalar_select %p250, %s251, %s252
      %p256 = pneg %p250
      %p257 = scmp.eq.s32.totalorder %s21, 1
      %p258 = por %p256, %p257
      %p259 = scmp.ne.s32.totalorder %s251, %s254
      %p260 = scmp.eq.s32.totalorder %s21, 0
      %p261 = por %p259, %p260
      %p262 = scmp.ne.s32.totalorder %s251, %s254
      %p263 = scmp.eq.s32.totalorder %s26, 1
      %p264 = por %p262, %p263
      %p265 = scmp.ne.s32.totalorder %s254, %s255
      %p266 = scmp.eq.s32.totalorder %s26, 0
      %p267 = por %p265, %p266
      %p268 = scmp.ne.s32.totalorder %s254, %s255
      %p269 = scmp.eq.s32.totalorder %s27, 1
      %p270 = por %p268, %p269
      %p272 = scmp.ne.s32.totalorder %s255, %s271
      %p273 = scmp.eq.s32.totalorder %s27, 0
      %p274 = por %p272, %p273
      %s275 = ssub.s32 %s29, %s36
      %s276 = ssub.s32 %s28, %s40
      %s277 = sor.u32 %s275, %s276
      %p278 = scmp.eq.s32.totalorder %s277, 0
      %s280 = sadd.s32 %s279, 1
      %s281 = scalar_select %p278, %s279, %s280
      %p284 = pneg %p278
      %p285 = scmp.eq.s32.totalorder %s21, 1
      %p286 = por %p284, %p285
      %p287 = scmp.ne.s32.totalorder %s279, %s282
      %p288 = scmp.eq.s32.totalorder %s21, 0
      %p289 = por %p287, %p288
      %p290 = scmp.ne.s32.totalorder %s279, %s282
      %p291 = scmp.eq.s32.totalorder %s26, 1
      %p292 = por %p290, %p291
      %p293 = scmp.ne.s32.totalorder %s282, %s283
      %p294 = scmp.eq.s32.totalorder %s26, 0
      %p295 = por %p293, %p294
      %p296 = scmp.ne.s32.totalorder %s282, %s283
      %p297 = scmp.eq.s32.totalorder %s27, 1
      %p298 = por %p296, %p297
      %p300 = scmp.ne.s32.totalorder %s283, %s299
      %p301 = scmp.eq.s32.totalorder %s27, 0
      %p302 = por %p300, %p301
      %p303 = scmp.le.s32.totalorder 1, %s21
      %p304 = scmp.lt.s32.totalorder %s21, 3
      %p305 = pnand %p303, %p304
      %p306 = pneg %p305
      // Predicated region
      $region9: #{tpu_custom_call.1} parent=5 // pred_check
        _
      $region10: #{tpu_custom_call.1} parent=5 // pred_check_branch
        %308 = sbr.rel (%p305) target = $region12
      $region11: #{tpu_custom_call.1} parent=5 // pred_region
        %s309 = ssub.s32 %s21, 1
        // Predicated region
        $region13: #{tpu_custom_call.1} parent=11 // pred_check
          %p310 = pneg %p59
        $region14: #{tpu_custom_call.1} parent=11 // pred_check_branch
          %312 = sbr.rel (%p310) target = $region16
        $region15: #{tpu_custom_call.1} parent=11 // pred_region
          %s313 = smul.u32 2, %s30
          %p314 = scmp.lt.s32.totalorder %s313, 1
          %s315 = scalar_select %p314, %s313, 1
          %s316 = smul.addr %s315, 8
          %s317 = scalar_lea.vmem %s0, %s316
          %s318 = smul.u32 2, %s30
        $region16: #{tpu_custom_call.1} parent=11 // pred_fallthru
          _
        // Predicated region
        $region17: #{tpu_custom_call.1} parent=11 // pred_check
          %p319 = pneg %p85
        $region18: #{tpu_custom_call.1} parent=11 // pred_check_branch
          %321 = sbr.rel (%p319) target = $region20
        $region19: #{tpu_custom_call.1} parent=11 // pred_region
          %s322 = smul.u32 2, %s30
          %p323 = scmp.lt.s32.totalorder %s322, 1
          %s324 = scalar_select %p323, %s322, 1
          %s325 = scalar_lea.vmem %s1, %s324
          %s326 = smul.u32 2, %s30
        $region20: #{tpu_custom_call.1} parent=11 // pred_fallthru
          _
      $region12: #{tpu_custom_call.1} parent=5 // pred_fallthru
        _
      %p327 = scmp.lt.s32.totalorder %s21, 2
      // Predicated region
      $region21: #{tpu_custom_call.1} parent=5 // pred_check
        %p328 = pneg %p327
      $region22: #{tpu_custom_call.1} parent=5 // pred_check_branch
        %330 = sbr.rel (%p328) target = $region24
      $region23: #{tpu_custom_call.1} parent=5 // pred_region
        // Predicated region
        $region25: #{tpu_custom_call.1} parent=23 // pred_check
          %p331 = pneg %p105
        $region26: #{tpu_custom_call.1} parent=23 // pred_check_branch
          %333 = sbr.rel (%p331) target = $region28
        $region27: #{tpu_custom_call.1} parent=23 // pred_region
          %p334 = scmp.lt.s32.totalorder %s29, 1
          %s335 = scalar_select %p334, %s29, 1
          %s336 = smul.addr %s335, 4
          %s337 = smul.addr %s336, 4
          %s338 = scalar_lea.vmem %s2, %s337
        $region28: #{tpu_custom_call.1} parent=23 // pred_fallthru
          _
        // Predicated region
        $region29: #{tpu_custom_call.1} parent=23 // pred_check
          %p339 = pneg %p131
        $region30: #{tpu_custom_call.1} parent=23 // pred_check_branch
          %341 = sbr.rel (%p339) target = $region32
        $region31: #{tpu_custom_call.1} parent=23 // pred_region
          %s342 = sand.u32 %s121, 1
          %s343 = scalar_lea.sflag [#allocation4], %s342
          %s344 = sand.u32 %s121, 1
          %s345 = scalar_lea.vmem [#allocation3], %s344
          %s347 = ssub.s32 16, 16
          %348 = vsyncadd %s343, %s347
          %s349 = smul.addr %s29, 16
          %s350 = scalar_lea.hbm %s3, %s349
          %s352 = sshll.u32 %s345, 4
          %s353 = int_to_ptr.vmem [resolvable:$true] %s352
          %355 = dma.hbm_to_vmem [thread:$0]  %s350, 16, %s353, %s343
        $region32: #{tpu_custom_call.1} parent=23 // pred_fallthru
          _
        // Predicated region
        $region33: #{tpu_custom_call.1} parent=23 // pred_check
          %p356 = pneg %p157
        $region34: #{tpu_custom_call.1} parent=23 // pred_check_branch
          %358 = sbr.rel (%p356) target = $region36
        $region35: #{tpu_custom_call.1} parent=23 // pred_region
          %p359 = scmp.lt.s32.totalorder %s29, 1
          %s360 = scalar_select %p359, %s29, 1
          %s361 = smul.addr %s360, 4
          %s362 = smul.addr %s361, 4
          %s363 = scalar_lea.vmem %s4, %s362
        $region36: #{tpu_custom_call.1} parent=23 // pred_fallthru
          _
        // Predicated region
        $region37: #{tpu_custom_call.1} parent=23 // pred_check
          %p364 = pneg %p183
        $region38: #{tpu_custom_call.1} parent=23 // pred_check_branch
          %366 = sbr.rel (%p364) target = $region40
        $region39: #{tpu_custom_call.1} parent=23 // pred_region
          %p367 = scmp.lt.s32.totalorder %s29, 1
          %s368 = scalar_select %p367, %s29, 1
          %s369 = smul.addr %s368, 4
          %s370 = smul.addr %s369, 4
          %s371 = scalar_lea.vmem %s5, %s370
        $region40: #{tpu_custom_call.1} parent=23 // pred_fallthru
          _
        // Predicated region
        $region41: #{tpu_custom_call.1} parent=23 // pred_check
          %p372 = pneg %p209
        $region42: #{tpu_custom_call.1} parent=23 // pred_check_branch
          %374 = sbr.rel (%p372) target = $region44
        $region43: #{tpu_custom_call.1} parent=23 // pred_region
          %p375 = scmp.lt.s32.totalorder %s29, 1
          %s376 = scalar_select %p375, %s29, 1
          %s377 = smul.addr %s376, 8
          %s378 = smul.addr %s377, 4
          %s379 = scalar_lea.vmem %s6, %s378
        $region44: #{tpu_custom_call.1} parent=23 // pred_fallthru
          _
        // Predicated region
        $region45: #{tpu_custom_call.1} parent=23 // pred_check
          %p380 = pneg %p235
        $region46: #{tpu_custom_call.1} parent=23 // pred_check_branch
          %382 = sbr.rel (%p380) target = $region48
        $region47: #{tpu_custom_call.1} parent=23 // pred_region
          %p383 = scmp.lt.s32.totalorder %s29, 1
          %s384 = scalar_select %p383, %s29, 1
          %s385 = smul.addr %s384, 8
          %s386 = scalar_lea.vmem %s7, %s385
        $region48: #{tpu_custom_call.1} parent=23 // pred_fallthru
          _
        // Predicated region
        $region49: #{tpu_custom_call.1} parent=23 // pred_check
          %p387 = pneg %p261
        $region50: #{tpu_custom_call.1} parent=23 // pred_check_branch
          %389 = sbr.rel (%p387) target = $region52
        $region51: #{tpu_custom_call.1} parent=23 // pred_region
          %p390 = scmp.lt.s32.totalorder %s29, 1
          %s391 = scalar_select %p390, %s29, 1
          %s392 = scalar_lea.vmem %s8, %s391
        $region52: #{tpu_custom_call.1} parent=23 // pred_fallthru
          _
      $region24: #{tpu_custom_call.1} parent=5 // pred_fallthru
        _
      %p393 = scmp.le.s32.totalorder 1, %s21
      %p394 = scmp.lt.s32.totalorder %s21, 3
      %p395 = pnand %p393, %p394
      %p396 = pneg %p395
      // Predicated region
      $region53: #{tpu_custom_call.1} parent=5 // pred_check
        _
      $region54: #{tpu_custom_call.1} parent=5 // pred_check_branch
        %398 = sbr.rel (%p395) target = $region56
      $region55: #{tpu_custom_call.1} parent=5 // pred_region
        %s399 = ssub.s32 %s21, 1
        %s400 = sand.u32 %s124, 1
        %s401 = scalar_lea.sflag [#allocation4], %s400
        %s402 = sand.u32 %s124, 1
        %s403 = scalar_lea.vmem [#allocation3], %s402
        // Predicated region
        $region57: #{tpu_custom_call.1} parent=55 // pred_check
          %p404 = pneg %p137
        $region58: #{tpu_custom_call.1} parent=55 // pred_check_branch
          %406 = sbr.rel (%p404) target = $region60
        $region59: #{tpu_custom_call.1} parent=55 // pred_region
          %407 = dma.done %s401, 16
        $region60: #{tpu_custom_call.1} parent=55 // pred_fallthru
          _
        %s408 = smul.u32 2, %s30
        %p409 = scmp.lt.s32.totalorder %s408, 1
        %s410 = scalar_select %p409, %s408, 1
        %s411 = smul.addr %s410, 8
        %s412 = scalar_lea.vmem %s0, %s411
        %p413 = pneg %p59
        %p414 = pneg %p56
        %s415 = smul.u32 2, %s30
        %p416 = scmp.lt.s32.totalorder %s415, 1
        %s417 = scalar_select %p416, %s415, 1
        %s418 = scalar_lea.vmem %s1, %s417
        %p419 = pneg %p85
        %p420 = pneg %p82
        %p421 = scmp.lt.s32.totalorder %s31, 1
        %s422 = scalar_select %p421, %s31, 1
        %s423 = smul.addr %s422, 4
        %s424 = smul.addr %s423, 4
        %s425 = scalar_lea.vmem %s2, %s424
        %p426 = pneg %p111
        %p427 = pneg %p108
        %s428 = sand.u32 %s124, 1
        %s429 = scalar_lea.sflag [#allocation4], %s428
        %s430 = sand.u32 %s124, 1
        %s431 = scalar_lea.vmem [#allocation3], %s430
        %p432 = pneg %p137
        %p433 = pneg %p134
        %p434 = scmp.lt.s32.totalorder %s31, 1
        %s435 = scalar_select %p434, %s31, 1
        %s436 = smul.addr %s435, 4
        %s437 = smul.addr %s436, 4
        %s438 = scalar_lea.vmem %s4, %s437
        %p439 = pneg %p163
        %p440 = pneg %p160
        %p441 = scmp.lt.s32.totalorder %s31, 1
        %s442 = scalar_select %p441, %s31, 1
        %s443 = smul.addr %s442, 4
        %s444 = smul.addr %s443, 4
        %s445 = scalar_lea.vmem %s5, %s444
        %p446 = pneg %p189
        %p447 = pneg %p186
        %p448 = scmp.lt.s32.totalorder %s31, 1
        %s449 = scalar_select %p448, %s31, 1
        %s450 = smul.addr %s449, 8
        %s451 = smul.addr %s450, 4
        %s452 = scalar_lea.vmem %s6, %s451
        %p453 = pneg %p215
        %p454 = pneg %p212
        %p455 = scmp.lt.s32.totalorder %s31, 1
        %s456 = scalar_select %p455, %s31, 1
        %s457 = smul.addr %s456, 8
        %s458 = scalar_lea.vmem %s7, %s457
        %p459 = pneg %p241
        %p460 = pneg %p238
        %p461 = scmp.lt.s32.totalorder %s31, 1
        %s462 = scalar_select %p461, %s31, 1
        %s463 = scalar_lea.vmem %s8, %s462
        %p464 = pneg %p267
        %p465 = pneg %p264
        %p466 = pneg %p295
        %p467 = pneg %p292
        %s468 = sand.u32 %s282, 1
        %s469 = scalar_lea.sflag [#allocation5], %s468
        %s470 = sand.u32 %s282, 1
        %s471 = smul.addr %s470, 16
        %s472 = scalar_lea.vmem [#allocation6], %s471
        %s473 = smul.u32 2, %s30
        %p474 = scmp.lt.s32.totalorder %s473, 1
        %s475 = scalar_select %p474, %s473, 1
        %s476 = smul.addr %s475, 8
        %s477 = scalar_lea.vmem %s0, %s476
        %s478 = smul.u32 2, %s30
        %s479 = smul.u32 2, %s30
        %p480 = scmp.lt.s32.totalorder %s479, 1
        %s481 = scalar_select %p480, %s479, 1
        %s482 = scalar_lea.vmem %s1, %s481
        %s483 = smul.u32 2, %s30
        %p484 = scmp.lt.s32.totalorder %s31, 1
        %s485 = scalar_select %p484, %s31, 1
        %s486 = smul.addr %s485, 4
        %s487 = smul.addr %s486, 4
        %s488 = scalar_lea.vmem %s2, %s487
        %p489 = scmp.lt.s32.totalorder %s31, 1
        %s490 = scalar_select %p489, %s31, 1
        %s491 = smul.addr %s490, 4
        %s492 = smul.addr %s491, 4
        %s493 = scalar_lea.vmem %s4, %s492
        %p494 = scmp.lt.s32.totalorder %s31, 1
        %s495 = scalar_select %p494, %s31, 1
        %s496 = smul.addr %s495, 4
        %s497 = smul.addr %s496, 4
        %s498 = scalar_lea.vmem %s5, %s497
        %p499 = scmp.lt.s32.totalorder %s31, 1
        %s500 = scalar_select %p499, %s31, 1
        %s501 = smul.addr %s500, 8
        %s502 = smul.addr %s501, 4
        %s503 = scalar_lea.vmem %s6, %s502
        %p504 = scmp.lt.s32.totalorder %s31, 1
        %s505 = scalar_select %p504, %s31, 1
        %s506 = smul.addr %s505, 8
        %s507 = scalar_lea.vmem %s7, %s506
        %p508 = scmp.lt.s32.totalorder %s31, 1
        %s509 = scalar_select %p508, %s31, 1
        %s510 = scalar_lea.vmem %s8, %s509
        %s511 = smul.u32 2, %s30
        %p513 = scmp.eq.s32.totalorder %s31, 0
        // Predicated region
        $region61: #{tpu_custom_call.1} parent=55 // pred_check
          %p514 = pneg %p513
        $region62: #{tpu_custom_call.1} parent=55 // pred_check_branch
          %516 = sbr.rel (%p514) target = $region64
        $region63: #{tpu_custom_call.1} parent=55 // pred_region
          %v517 = vld [vmem:[%s477] sm:$0xff]
          %v518 = vld [vmem:[%s477 + $0x8] sm:$0xff]
          %vm519 = vcmask 261120
          %520 = vst.msk [vmem:[#allocation2] sm:$0xff] %vm519, %v517
          %521 = vst.msk [vmem:[#allocation2 + $0x8] sm:$0xff] %vm519, %v518
        $region64: #{tpu_custom_call.1} parent=55 // pred_fallthru
          _
        %v522 = vld [vmem:[#allocation2] sm:$0xff]
        %v523 = vld [vmem:[#allocation2 + $0x8] sm:$0xff]
        %v524 = vld [vmem:[%s507] sm:$0x3f]
        %v525 = vld [vmem:[%s482] sm:$0x1]
        %v526 = vld [vmem:[%s482 + $0x1] sm:$0x1]
        %v527 = vpack.c.bf16 %v523, %v522
        %v528 = vld [vmem:[%s488] sm:$0xf]
        %v529 = vld [vmem:[%s488 + $0x4] sm:$0xf]
        %v530 = vld [vmem:[%s488 + $0x8] sm:$0xf]
        %v531 = vld [vmem:[%s488 + $0xc] sm:$0xf]
        %v532 = vld [vmem:[%s403] sm:$0x1]
        %v534 = vlaneseq
        %v535 = vshrl.u32 %v534, 7
        %v536 = vsub.s32 0, %v535
        %v537 = vrot.slane %v532, %v536
        %v543 = vunpack.c.l.b16 %v528
        %v544 = vunpack.c.l.b16 %v529
        %v545 = vunpack.c.l.b16 %v530
        %v546 = vunpack.c.l.b16 %v531
        %v547 = vpack.c.b16 %v544, %v543
        %v548 = vpack.c.b16 %v546, %v545
        %vm551 = vcmask 261120
        %v553 = vsel %vm551, %v527, 0
        %555 = vmatprep.subr.bf16.mxu0 0
        %556 = vmatpush1.bf16.msra.mxu0 %v547
        %557 = vmatprep.subr.bf16.mxu0 0
        %558 = vmatpush1.bf16.msra.mxu0 %v548
        %559 = vmatprep.subr.bf16.mxu0 0
        %560 = vmatpush1.bf16.msra.mxu0 0
        %561 = vmatprep.subr.bf16.mxu0 0
        %562 = vmatpush1.bf16.msra.mxu0 0
        %563 = vmatprep.subr.bf16.mxu0 0
        %564 = vmatpush1.bf16.msra.mxu0 0
        %565 = vmatprep.subr.bf16.mxu0 0
        %566 = vmatpush1.bf16.msra.mxu0 0
        %567 = vmatprep.subr.bf16.mxu0 0
        %568 = vmatpush1.bf16.msra.mxu0 0
        %569 = vmatprep.subr.bf16.mxu0 0
        %570 = vmatpush1.bf16.msra.mxu0 0
        %571 = vmatprep.subr.bf16.mxu0 0
        %572 = vmatpush1.bf16.msra.mxu0 0
        %573 = vmatprep.subr.bf16.mxu0 0
        %574 = vmatpush1.bf16.msra.mxu0 0
        %575 = vmatprep.subr.bf16.mxu0 0
        %576 = vmatpush1.bf16.msra.mxu0 0
        %577 = vmatprep.subr.bf16.mxu0 0
        %578 = vmatpush1.bf16.msra.mxu0 0
        %579 = vmatprep.subr.bf16.mxu0 0
        %580 = vmatpush1.bf16.msra.mxu0 0
        %581 = vmatprep.subr.bf16.mxu0 0
        %582 = vmatpush1.bf16.msra.mxu0 0
        %583 = vmatprep.subr.bf16.mxu0 0
        %584 = vmatpush1.bf16.msra.mxu0 0
        %585 = vmatprep.subr.bf16.mxu0 0
        %586 = vmatpush1.bf16.msra.mxu0 0
        %587 = vmatprep.mubr.bf16.mxu0 0
        %588 = vmatmul.mubr.bf16.gmra.mrb[0].mxu0 %v553
        %v589 = vpop.f32.mrb[0].mxu0
        %v590 = vadd.f32 %v537, %v589
        %v591 = vpop.f32.mrb[0].mxu0
        %v592 = vpop.f32.mrb[0].mxu0
        %v593 = vadd.f32 %v537, %v592
        %v594 = vpop.f32.mrb[0].mxu0
        %595 = vdwg.mxu0
        %v596 = vpack.c.bf16 %v593, %v590
        %v598 = vlaneseq
        %v599 = vshrl.u32 %v598, 7
        %v600 = vsub.s32 0, %v599
        %v601 = vrot.slane %v525, %v600
        %604 = vrot.lane.b32.xlu0 %v596, 96
        %v605 = vpop.permute.xlu0 %604
        %vm606 = vcmask 64512
        %v608 = vsel %vm606, %v596, 0
        %v611 = vsel %vm606, %v605, 0
        %613 = vmatprep.subr.bf16.mxu0 0
        %614 = vmatpush1.bf16.xpose.msra.mxu0 %v611
        %615 = vmatprep.subr.bf16.mxu0 0
        %616 = vmatpush1.bf16.xpose.msra.mxu0 0
        %617 = vmatprep.subr.bf16.mxu0 0
        %618 = vmatpush1.bf16.xpose.msra.mxu0 0
        %619 = vmatprep.subr.bf16.mxu0 0
        %620 = vmatpush1.bf16.xpose.msra.mxu0 0
        %621 = vmatprep.subr.bf16.mxu0 0
        %622 = vmatpush1.bf16.xpose.msra.mxu0 0
        %623 = vmatprep.subr.bf16.mxu0 0
        %624 = vmatpush1.bf16.xpose.msra.mxu0 0
        %625 = vmatprep.subr.bf16.mxu0 0
        %626 = vmatpush1.bf16.xpose.msra.mxu0 0
        %627 = vmatprep.subr.bf16.mxu0 0
        %628 = vmatpush1.bf16.xpose.msra.mxu0 0
        %629 = vmatprep.subr.bf16.mxu0 0
        %630 = vmatpush1.bf16.xpose.msra.mxu0 0
        %631 = vmatprep.subr.bf16.mxu0 0
        %632 = vmatpush1.bf16.xpose.msra.mxu0 0
        %633 = vmatprep.subr.bf16.mxu0 0
        %634 = vmatpush1.bf16.xpose.msra.mxu0 0
        %635 = vmatprep.subr.bf16.mxu0 0
        %636 = vmatpush1.bf16.xpose.msra.mxu0 0
        %637 = vmatprep.subr.bf16.mxu0 0
        %638 = vmatpush1.bf16.xpose.msra.mxu0 0
        %639 = vmatprep.subr.bf16.mxu0 0
        %640 = vmatpush1.bf16.xpose.msra.mxu0 0
        %641 = vmatprep.subr.bf16.mxu0 0
        %642 = vmatpush1.bf16.xpose.msra.mxu0 0
        %643 = vmatprep.subr.bf16.mxu0 0
        %644 = vmatpush1.bf16.xpose.msra.mxu0 0
        %645 = vmatprep.mubr.bf16.mxu0 0
        %646 = vmatmul.mubr.bf16.gmra.mrb[0].mxu0 %v608
        %v647 = vpop.f32.mrb[0].mxu0
        %v648 = vadd.f32 %v601, %v647
        %v649 = vpop.f32.mrb[0].mxu0
        %v650 = vpop.f32.mrb[0].mxu0
        %v651 = vpop.f32.mrb[0].mxu0
        %652 = vdwg.mxu0
        %v653 = vsel %vm606, %v648, -inf
        %654 = vmax.xlane.f32.xlu0 %v653
        %v655 = vpop.xlane.xlu0 %654
        %v656 = vsub.f32 %v648, %v655
        %v657 = vmul.f32 %v656, 1.442695
        %v658 = vpow.pop %v657
        %v659 = vsel %vm606, %v658, 0.0
        %660 = vadd.xlane.f32.xlu0 %v659
        %v661 = vpop.xlane.xlu0 %660
        %v662 = vrcp.pop %v661
        %v663 = vmul.f32 %v658, %v662
        %v664 = vpack.c.bf16 %v663, %v663
        %665 = vrot.lane.b32.xlu0 %v596, 64
        %v666 = vpop.permute.xlu0 %665
        %v668 = vsel %vm606, %v664, 0
        %vm670 = vcmask 1043456
        %v672 = vsel %vm670, %v666, 0
        %674 = vmatprep.subr.bf16.mxu0 0
        %675 = vmatpush1.bf16.msra.mxu0 %v672
        %676 = vmatprep.subr.bf16.mxu0 0
        %677 = vmatpush1.bf16.msra.mxu0 0
        %678 = vmatprep.subr.bf16.mxu0 0
        %679 = vmatpush1.bf16.msra.mxu0 0
        %680 = vmatprep.subr.bf16.mxu0 0
        %681 = vmatpush1.bf16.msra.mxu0 0
        %682 = vmatprep.subr.bf16.mxu0 0
        %683 = vmatpush1.bf16.msra.mxu0 0
        %684 = vmatprep.subr.bf16.mxu0 0
        %685 = vmatpush1.bf16.msra.mxu0 0
        %686 = vmatprep.subr.bf16.mxu0 0
        %687 = vmatpush1.bf16.msra.mxu0 0
        %688 = vmatprep.subr.bf16.mxu0 0
        %689 = vmatpush1.bf16.msra.mxu0 0
        %690 = vmatprep.subr.bf16.mxu0 0
        %691 = vmatpush1.bf16.msra.mxu0 0
        %692 = vmatprep.subr.bf16.mxu0 0
        %693 = vmatpush1.bf16.msra.mxu0 0
        %694 = vmatprep.subr.bf16.mxu0 0
        %695 = vmatpush1.bf16.msra.mxu0 0
        %696 = vmatprep.subr.bf16.mxu0 0
        %697 = vmatpush1.bf16.msra.mxu0 0
        %698 = vmatprep.subr.bf16.mxu0 0
        %699 = vmatpush1.bf16.msra.mxu0 0
        %700 = vmatprep.subr.bf16.mxu0 0
        %701 = vmatpush1.bf16.msra.mxu0 0
        %702 = vmatprep.subr.bf16.mxu0 0
        %703 = vmatpush1.bf16.msra.mxu0 0
        %704 = vmatprep.subr.bf16.mxu0 0
        %705 = vmatpush1.bf16.msra.mxu0 0
        %706 = vmatprep.mubr.bf16.mxu0 0
        %707 = vmatmul.mubr.bf16.gmra.mrb[0].mxu0 %v668
        %v708 = vpop.f32.mrb[0].mxu0
        %v709 = vadd.f32 0.0, %v708
        %v710 = vpop.f32.mrb[0].mxu0
        %v711 = vpop.f32.mrb[0].mxu0
        %v712 = vpop.f32.mrb[0].mxu0
        %713 = vdwg.mxu0
        %714 = vrot.lane.b32.xlu0 %v596, 120
        %v715 = vpop.permute.xlu0 %714
        %716 = vrot.lane.b32.xlu0 %v596, 88
        %v717 = vpop.permute.xlu0 %716
        %v719 = vsel %vm606, %v715, 0
        %v722 = vsel %vm606, %v717, 0
        %724 = vmatprep.subr.bf16.mxu0 0
        %725 = vmatpush1.bf16.xpose.msra.mxu0 %v722
        %726 = vmatprep.subr.bf16.mxu0 0
        %727 = vmatpush1.bf16.xpose.msra.mxu0 0
        %728 = vmatprep.subr.bf16.mxu0 0
        %729 = vmatpush1.bf16.xpose.msra.mxu0 0
        %730 = vmatprep.subr.bf16.mxu0 0
        %731 = vmatpush1.bf16.xpose.msra.mxu0 0
        %732 = vmatprep.subr.bf16.mxu0 0
        %733 = vmatpush1.bf16.xpose.msra.mxu0 0
        %734 = vmatprep.subr.bf16.mxu0 0
        %735 = vmatpush1.bf16.xpose.msra.mxu0 0
        %736 = vmatprep.subr.bf16.mxu0 0
        %737 = vmatpush1.bf16.xpose.msra.mxu0 0
        %738 = vmatprep.subr.bf16.mxu0 0
        %739 = vmatpush1.bf16.xpose.msra.mxu0 0
        %740 = vmatprep.subr.bf16.mxu0 0
        %741 = vmatpush1.bf16.xpose.msra.mxu0 0
        %742 = vmatprep.subr.bf16.mxu0 0
        %743 = vmatpush1.bf16.xpose.msra.mxu0 0
        %744 = vmatprep.subr.bf16.mxu0 0
        %745 = vmatpush1.bf16.xpose.msra.mxu0 0
        %746 = vmatprep.subr.bf16.mxu0 0
        %747 = vmatpush1.bf16.xpose.msra.mxu0 0
        %748 = vmatprep.subr.bf16.mxu0 0
        %749 = vmatpush1.bf16.xpose.msra.mxu0 0
        %750 = vmatprep.subr.bf16.mxu0 0
        %751 = vmatpush1.bf16.xpose.msra.mxu0 0
        %752 = vmatprep.subr.bf16.mxu0 0
        %753 = vmatpush1.bf16.xpose.msra.mxu0 0
        %754 = vmatprep.subr.bf16.mxu0 0
        %755 = vmatpush1.bf16.xpose.msra.mxu0 0
        %756 = vmatprep.mubr.bf16.mxu0 0
        %757 = vmatmul.mubr.bf16.gmra.mrb[0].mxu0 %v719
        %v758 = vpop.f32.mrb[0].mxu0
        %v759 = vadd.f32 %v601, %v758
        %v760 = vpop.f32.mrb[0].mxu0
        %v761 = vpop.f32.mrb[0].mxu0
        %v762 = vpop.f32.mrb[0].mxu0
        %763 = vdwg.mxu0
        %v764 = vsel %vm606, %v759, -inf
        %765 = vmax.xlane.f32.xlu0 %v764
        %v766 = vpop.xlane.xlu0 %765
        %v767 = vsub.f32 %v759, %v766
        %v768 = vmul.f32 %v767, 1.442695
        %v769 = vpow.pop %v768
        %v770 = vsel %vm606, %v769, 0.0
        %771 = vadd.xlane.f32.xlu0 %v770
        %v772 = vpop.xlane.xlu0 %771
        %v773 = vrcp.pop %v772
        %v774 = vmul.f32 %v769, %v773
        %v775 = vpack.c.bf16 %v774, %v774
        %776 = vrot.lane.b32.xlu0 %v596, 56
        %v777 = vpop.permute.xlu0 %776
        %v779 = vsel %vm606, %v775, 0
        %v782 = vsel %vm670, %v777, 0
        %784 = vmatprep.subr.bf16.mxu0 0
        %785 = vmatpush1.bf16.msra.mxu0 %v782
        %786 = vmatprep.subr.bf16.mxu0 0
        %787 = vmatpush1.bf16.msra.mxu0 0
        %788 = vmatprep.subr.bf16.mxu0 0
        %789 = vmatpush1.bf16.msra.mxu0 0
        %790 = vmatprep.subr.bf16.mxu0 0
        %791 = vmatpush1.bf16.msra.mxu0 0
        %792 = vmatprep.subr.bf16.mxu0 0
        %793 = vmatpush1.bf16.msra.mxu0 0
        %794 = vmatprep.subr.bf16.mxu0 0
        %795 = vmatpush1.bf16.msra.mxu0 0
        %796 = vmatprep.subr.bf16.mxu0 0
        %797 = vmatpush1.bf16.msra.mxu0 0
        %798 = vmatprep.subr.bf16.mxu0 0
        %799 = vmatpush1.bf16.msra.mxu0 0
        %800 = vmatprep.subr.bf16.mxu0 0
        %801 = vmatpush1.bf16.msra.mxu0 0
        %802 = vmatprep.subr.bf16.mxu0 0
        %803 = vmatpush1.bf16.msra.mxu0 0
        %804 = vmatprep.subr.bf16.mxu0 0
        %805 = vmatpush1.bf16.msra.mxu0 0
        %806 = vmatprep.subr.bf16.mxu0 0
        %807 = vmatpush1.bf16.msra.mxu0 0
        %808 = vmatprep.subr.bf16.mxu0 0
        %809 = vmatpush1.bf16.msra.mxu0 0
        %810 = vmatprep.subr.bf16.mxu0 0
        %811 = vmatpush1.bf16.msra.mxu0 0
        %812 = vmatprep.subr.bf16.mxu0 0
        %813 = vmatpush1.bf16.msra.mxu0 0
        %814 = vmatprep.subr.bf16.mxu0 0
        %815 = vmatpush1.bf16.msra.mxu0 0
        %816 = vmatprep.mubr.bf16.mxu0 0
        %817 = vmatmul.mubr.bf16.gmra.mrb[0].mxu0 %v779
        %v818 = vpop.f32.mrb[0].mxu0
        %v819 = vadd.f32 0.0, %v818
        %v820 = vpop.f32.mrb[0].mxu0
        %v821 = vpop.f32.mrb[0].mxu0
        %v822 = vpop.f32.mrb[0].mxu0
        %823 = vdwg.mxu0
        %824 = vrot.lane.b32.xlu0 %v596, 112
        %v825 = vpop.permute.xlu0 %824
        %826 = vrot.lane.b32.xlu0 %v596, 80
        %v827 = vpop.permute.xlu0 %826
        %v829 = vsel %vm606, %v825, 0
        %v832 = vsel %vm606, %v827, 0
        %834 = vmatprep.subr.bf16.mxu0 0
        %835 = vmatpush1.bf16.xpose.msra.mxu0 %v832
        %836 = vmatprep.subr.bf16.mxu0 0
        %837 = vmatpush1.bf16.xpose.msra.mxu0 0
        %838 = vmatprep.subr.bf16.mxu0 0
        %839 = vmatpush1.bf16.xpose.msra.mxu0 0
        %840 = vmatprep.subr.bf16.mxu0 0
        %841 = vmatpush1.bf16.xpose.msra.mxu0 0
        %842 = vmatprep.subr.bf16.mxu0 0
        %843 = vmatpush1.bf16.xpose.msra.mxu0 0
        %844 = vmatprep.subr.bf16.mxu0 0
        %845 = vmatpush1.bf16.xpose.msra.mxu0 0
        %846 = vmatprep.subr.bf16.mxu0 0
        %847 = vmatpush1.bf16.xpose.msra.mxu0 0
        %848 = vmatprep.subr.bf16.mxu0 0
        %849 = vmatpush1.bf16.xpose.msra.mxu0 0
        %850 = vmatprep.subr.bf16.mxu0 0
        %851 = vmatpush1.bf16.xpose.msra.mxu0 0
        %852 = vmatprep.subr.bf16.mxu0 0
        %853 = vmatpush1.bf16.xpose.msra.mxu0 0
        %854 = vmatprep.subr.bf16.mxu0 0
        %855 = vmatpush1.bf16.xpose.msra.mxu0 0
        %856 = vmatprep.subr.bf16.mxu0 0
        %857 = vmatpush1.bf16.xpose.msra.mxu0 0
        %858 = vmatprep.subr.bf16.mxu0 0
        %859 = vmatpush1.bf16.xpose.msra.mxu0 0
        %860 = vmatprep.subr.bf16.mxu0 0
        %861 = vmatpush1.bf16.xpose.msra.mxu0 0
        %862 = vmatprep.subr.bf16.mxu0 0
        %863 = vmatpush1.bf16.xpose.msra.mxu0 0
        %864 = vmatprep.subr.bf16.mxu0 0
        %865 = vmatpush1.bf16.xpose.msra.mxu0 0
        %866 = vmatprep.mubr.bf16.mxu0 0
        %867 = vmatmul.mubr.bf16.gmra.mrb[0].mxu0 %v829
        %v868 = vpop.f32.mrb[0].mxu0
        %v869 = vadd.f32 %v601, %v868
        %v870 = vpop.f32.mrb[0].mxu0
        %v871 = vpop.f32.mrb[0].mxu0
        %v872 = vpop.f32.mrb[0].mxu0
        %873 = vdwg.mxu0
        %v874 = vsel %vm606, %v869, -inf
        %875 = vmax.xlane.f32.xlu0 %v874
        %v876 = vpop.xlane.xlu0 %875
        %v877 = vsub.f32 %v869, %v876
        %v878 = vmul.f32 %v877, 1.442695
        %v879 = vpow.pop %v878
        %v880 = vsel %vm606, %v879, 0.0
        %881 = vadd.xlane.f32.xlu0 %v880
        %v882 = vpop.xlane.xlu0 %881
        %v883 = vrcp.pop %v882
        %v884 = vmul.f32 %v879, %v883
        %v885 = vpack.c.bf16 %v884, %v884
        %886 = vrot.lane.b32.xlu0 %v596, 48
        %v887 = vpop.permute.xlu0 %886
        %v889 = vsel %vm606, %v885, 0
        %v892 = vsel %vm670, %v887, 0
        %894 = vmatprep.subr.bf16.mxu0 0
        %895 = vmatpush1.bf16.msra.mxu0 %v892
        %896 = vmatprep.subr.bf16.mxu0 0
        %897 = vmatpush1.bf16.msra.mxu0 0
        %898 = vmatprep.subr.bf16.mxu0 0
        %899 = vmatpush1.bf16.msra.mxu0 0
        %900 = vmatprep.subr.bf16.mxu0 0
        %901 = vmatpush1.bf16.msra.mxu0 0
        %902 = vmatprep.subr.bf16.mxu0 0
        %903 = vmatpush1.bf16.msra.mxu0 0
        %904 = vmatprep.subr.bf16.mxu0 0
        %905 = vmatpush1.bf16.msra.mxu0 0
        %906 = vmatprep.subr.bf16.mxu0 0
        %907 = vmatpush1.bf16.msra.mxu0 0
        %908 = vmatprep.subr.bf16.mxu0 0
        %909 = vmatpush1.bf16.msra.mxu0 0
        %910 = vmatprep.subr.bf16.mxu0 0
        %911 = vmatpush1.bf16.msra.mxu0 0
        %912 = vmatprep.subr.bf16.mxu0 0
        %913 = vmatpush1.bf16.msra.mxu0 0
        %914 = vmatprep.subr.bf16.mxu0 0
        %915 = vmatpush1.bf16.msra.mxu0 0
        %916 = vmatprep.subr.bf16.mxu0 0
        %917 = vmatpush1.bf16.msra.mxu0 0
        %918 = vmatprep.subr.bf16.mxu0 0
        %919 = vmatpush1.bf16.msra.mxu0 0
        %920 = vmatprep.subr.bf16.mxu0 0
        %921 = vmatpush1.bf16.msra.mxu0 0
        %922 = vmatprep.subr.bf16.mxu0 0
        %923 = vmatpush1.bf16.msra.mxu0 0
        %924 = vmatprep.subr.bf16.mxu0 0
        %925 = vmatpush1.bf16.msra.mxu0 0
        %926 = vmatprep.mubr.bf16.mxu0 0
        %927 = vmatmul.mubr.bf16.gmra.mrb[0].mxu0 %v889
        %v928 = vpop.f32.mrb[0].mxu0
        %v929 = vadd.f32 0.0, %v928
        %v930 = vpop.f32.mrb[0].mxu0
        %v931 = vpop.f32.mrb[0].mxu0
        %v932 = vpop.f32.mrb[0].mxu0
        %933 = vdwg.mxu0
        %934 = vrot.lane.b32.xlu0 %v596, 104
        %v935 = vpop.permute.xlu0 %934
        %936 = vrot.lane.b32.xlu0 %v596, 72
        %v937 = vpop.permute.xlu0 %936
        %v939 = vsel %vm606, %v935, 0
        %v942 = vsel %vm606, %v937, 0
        %944 = vmatprep.subr.bf16.mxu0 0
        %945 = vmatpush1.bf16.xpose.msra.mxu0 %v942
        %946 = vmatprep.subr.bf16.mxu0 0
        %947 = vmatpush1.bf16.xpose.msra.mxu0 0
        %948 = vmatprep.subr.bf16.mxu0 0
        %949 = vmatpush1.bf16.xpose.msra.mxu0 0
        %950 = vmatprep.subr.bf16.mxu0 0
        %951 = vmatpush1.bf16.xpose.msra.mxu0 0
        %952 = vmatprep.subr.bf16.mxu0 0
        %953 = vmatpush1.bf16.xpose.msra.mxu0 0
        %954 = vmatprep.subr.bf16.mxu0 0
        %955 = vmatpush1.bf16.xpose.msra.mxu0 0
        %956 = vmatprep.subr.bf16.mxu0 0
        %957 = vmatpush1.bf16.xpose.msra.mxu0 0
        %958 = vmatprep.subr.bf16.mxu0 0
        %959 = vmatpush1.bf16.xpose.msra.mxu0 0
        %960 = vmatprep.subr.bf16.mxu0 0
        %961 = vmatpush1.bf16.xpose.msra.mxu0 0
        %962 = vmatprep.subr.bf16.mxu0 0
        %963 = vmatpush1.bf16.xpose.msra.mxu0 0
        %964 = vmatprep.subr.bf16.mxu0 0
        %965 = vmatpush1.bf16.xpose.msra.mxu0 0
        %966 = vmatprep.subr.bf16.mxu0 0
        %967 = vmatpush1.bf16.xpose.msra.mxu0 0
        %968 = vmatprep.subr.bf16.mxu0 0
        %969 = vmatpush1.bf16.xpose.msra.mxu0 0
        %970 = vmatprep.subr.bf16.mxu0 0
        %971 = vmatpush1.bf16.xpose.msra.mxu0 0
        %972 = vmatprep.subr.bf16.mxu0 0
        %973 = vmatpush1.bf16.xpose.msra.mxu0 0
        %974 = vmatprep.subr.bf16.mxu0 0
        %975 = vmatpush1.bf16.xpose.msra.mxu0 0
        %976 = vmatprep.mubr.bf16.mxu0 0
        %977 = vmatmul.mubr.bf16.gmra.mrb[0].mxu0 %v939
        %v978 = vpop.f32.mrb[0].mxu0
        %v979 = vadd.f32 %v601, %v978
        %v980 = vpop.f32.mrb[0].mxu0
        %v981 = vpop.f32.mrb[0].mxu0
        %v982 = vpop.f32.mrb[0].mxu0
        %983 = vdwg.mxu0
        %v984 = vsel %vm606, %v979, -inf
        %985 = vmax.xlane.f32.xlu0 %v984
        %v986 = vpop.xlane.xlu0 %985
        %v987 = vsub.f32 %v979, %v986
        %v988 = vmul.f32 %v987, 1.442695
        %v989 = vpow.pop %v988
        %v990 = vsel %vm606, %v989, 0.0
        %991 = vadd.xlane.f32.xlu0 %v990
        %v992 = vpop.xlane.xlu0 %991
        %v993 = vrcp.pop %v992
        %v994 = vmul.f32 %v989, %v993
        %v995 = vpack.c.bf16 %v994, %v994
        %996 = vrot.lane.b32.xlu0 %v596, 40
        %v997 = vpop.permute.xlu0 %996
        %v999 = vsel %vm606, %v995, 0
        %v1002 = vsel %vm670, %v997, 0
        %1004 = vmatprep.subr.bf16.mxu0 0
        %1005 = vmatpush1.bf16.msra.mxu0 %v1002
        %1006 = vmatprep.subr.bf16.mxu0 0
        %1007 = vmatpush1.bf16.msra.mxu0 0
        %1008 = vmatprep.subr.bf16.mxu0 0
        %1009 = vmatpush1.bf16.msra.mxu0 0
        %1010 = vmatprep.subr.bf16.mxu0 0
        %1011 = vmatpush1.bf16.msra.mxu0 0
        %1012 = vmatprep.subr.bf16.mxu0 0
        %1013 = vmatpush1.bf16.msra.mxu0 0
        %1014 = vmatprep.subr.bf16.mxu0 0
        %1015 = vmatpush1.bf16.msra.mxu0 0
        %1016 = vmatprep.subr.bf16.mxu0 0
        %1017 = vmatpush1.bf16.msra.mxu0 0
        %1018 = vmatprep.subr.bf16.mxu0 0
        %1019 = vmatpush1.bf16.msra.mxu0 0
        %1020 = vmatprep.subr.bf16.mxu0 0
        %1021 = vmatpush1.bf16.msra.mxu0 0
        %1022 = vmatprep.subr.bf16.mxu0 0
        %1023 = vmatpush1.bf16.msra.mxu0 0
        %1024 = vmatprep.subr.bf16.mxu0 0
        %1025 = vmatpush1.bf16.msra.mxu0 0
        %1026 = vmatprep.subr.bf16.mxu0 0
        %1027 = vmatpush1.bf16.msra.mxu0 0
        %1028 = vmatprep.subr.bf16.mxu0 0
        %1029 = vmatpush1.bf16.msra.mxu0 0
        %1030 = vmatprep.subr.bf16.mxu0 0
        %1031 = vmatpush1.bf16.msra.mxu0 0
        %1032 = vmatprep.subr.bf16.mxu0 0
        %1033 = vmatpush1.bf16.msra.mxu0 0
        %1034 = vmatprep.subr.bf16.mxu0 0
        %1035 = vmatpush1.bf16.msra.mxu0 0
        %1036 = vmatprep.mubr.bf16.mxu0 0
        %1037 = vmatmul.mubr.bf16.gmra.mrb[0].mxu0 %v999
        %v1038 = vpop.f32.mrb[0].mxu0
        %v1039 = vadd.f32 0.0, %v1038
        %v1040 = vpop.f32.mrb[0].mxu0
        %v1041 = vpop.f32.mrb[0].mxu0
        %v1042 = vpop.f32.mrb[0].mxu0
        %1043 = vdwg.mxu0
        %1045 = vrot.lane.b32.xlu0 %v819, 8
        %v1046 = vpop.permute.xlu0 %1045
        %1049 = vrot.lane.b32.xlu0 %v929, 16
        %v1050 = vpop.permute.xlu0 %1049
        %1053 = vrot.lane.b32.xlu0 %v1039, 24
        %v1054 = vpop.permute.xlu0 %1053
        %v1056 = vsel %vm606, %v709, %v1046
        %vm1057 = vcmask 130048
        %v1058 = vsel %vm1057, %v1056, %v1050
        %vm1059 = vcmask 195584
        %v1060 = vsel %vm1059, %v1058, %v1054
        %v1062 = vlaneseq
        %v1063 = vshrl.u32 %v1062, 7
        %v1064 = vsub.s32 0, %v1063
        %v1065 = vrot.slane %v526, %v1064
        %v1067 = vrot.slane %v596, 4
        %1068 = vrot.lane.b32.xlu0 %v1067, 96
        %v1069 = vpop.permute.xlu0 %1068
        %v1071 = vsel %vm606, %v1067, 0
        %v1074 = vsel %vm606, %v1069, 0
        %1076 = vmatprep.subr.bf16.mxu0 0
        %1077 = vmatpush1.bf16.xpose.msra.mxu0 %v1074
        %1078 = vmatprep.subr.bf16.mxu0 0
        %1079 = vmatpush1.bf16.xpose.msra.mxu0 0
        %1080 = vmatprep.subr.bf16.mxu0 0
        %1081 = vmatpush1.bf16.xpose.msra.mxu0 0
        %1082 = vmatprep.subr.bf16.mxu0 0
        %1083 = vmatpush1.bf16.xpose.msra.mxu0 0
        %1084 = vmatprep.subr.bf16.mxu0 0
        %1085 = vmatpush1.bf16.xpose.msra.mxu0 0
        %1086 = vmatprep.subr.bf16.mxu0 0
        %1087 = vmatpush1.bf16.xpose.msra.mxu0 0
        %1088 = vmatprep.subr.bf16.mxu0 0
        %1089 = vmatpush1.bf16.xpose.msra.mxu0 0
        %1090 = vmatprep.subr.bf16.mxu0 0
        %1091 = vmatpush1.bf16.xpose.msra.mxu0 0
        %1092 = vmatprep.subr.bf16.mxu0 0
        %1093 = vmatpush1.bf16.xpose.msra.mxu0 0
        %1094 = vmatprep.subr.bf16.mxu0 0
        %1095 = vmatpush1.bf16.xpose.msra.mxu0 0
        %1096 = vmatprep.subr.bf16.mxu0 0
        %1097 = vmatpush1.bf16.xpose.msra.mxu0 0
        %1098 = vmatprep.subr.bf16.mxu0 0
        %1099 = vmatpush1.bf16.xpose.msra.mxu0 0
        %1100 = vmatprep.subr.bf16.mxu0 0
        %1101 = vmatpush1.bf16.xpose.msra.mxu0 0
        %1102 = vmatprep.subr.bf16.mxu0 0
        %1103 = vmatpush1.bf16.xpose.msra.mxu0 0
        %1104 = vmatprep.subr.bf16.mxu0 0
        %1105 = vmatpush1.bf16.xpose.msra.mxu0 0
        %1106 = vmatprep.subr.bf16.mxu0 0
        %1107 = vmatpush1.bf16.xpose.msra.mxu0 0
        %1108 = vmatprep.mubr.bf16.mxu0 0
        %1109 = vmatmul.mubr.bf16.gmra.mrb[0].mxu0 %v1071
        %v1110 = vpop.f32.mrb[0].mxu0
        %v1111 = vadd.f32 %v1065, %v1110
        %v1112 = vpop.f32.mrb[0].mxu0
        %v1113 = vpop.f32.mrb[0].mxu0
        %v1114 = vpop.f32.mrb[0].mxu0
        %1115 = vdwg.mxu0
        %v1116 = vsel %vm606, %v1111, -inf
        %1117 = vmax.xlane.f32.xlu0 %v1116
        %v1118 = vpop.xlane.xlu0 %1117
        %v1119 = vsub.f32 %v1111, %v1118
        %v1120 = vmul.f32 %v1119, 1.442695
        %v1121 = vpow.pop %v1120
        %v1122 = vsel %vm606, %v1121, 0.0
        %1123 = vadd.xlane.f32.xlu0 %v1122
        %v1124 = vpop.xlane.xlu0 %1123
        %v1125 = vrcp.pop %v1124
        %v1126 = vmul.f32 %v1121, %v1125
        %v1127 = vpack.c.bf16 %v1126, %v1126
        %1128 = vrot.lane.b32.xlu0 %v1067, 64
        %v1129 = vpop.permute.xlu0 %1128
        %v1131 = vsel %vm606, %v1127, 0
        %v1134 = vsel %vm670, %v1129, 0
        %1136 = vmatprep.subr.bf16.mxu0 0
        %1137 = vmatpush1.bf16.msra.mxu0 %v1134
        %1138 = vmatprep.subr.bf16.mxu0 0
        %1139 = vmatpush1.bf16.msra.mxu0 0
        %1140 = vmatprep.subr.bf16.mxu0 0
        %1141 = vmatpush1.bf16.msra.mxu0 0
        %1142 = vmatprep.subr.bf16.mxu0 0
        %1143 = vmatpush1.bf16.msra.mxu0 0
        %1144 = vmatprep.subr.bf16.mxu0 0
        %1145 = vmatpush1.bf16.msra.mxu0 0
        %1146 = vmatprep.subr.bf16.mxu0 0
        %1147 = vmatpush1.bf16.msra.mxu0 0
        %1148 = vmatprep.subr.bf16.mxu0 0
        %1149 = vmatpush1.bf16.msra.mxu0 0
        %1150 = vmatprep.subr.bf16.mxu0 0
        %1151 = vmatpush1.bf16.msra.mxu0 0
        %1152 = vmatprep.subr.bf16.mxu0 0
        %1153 = vmatpush1.bf16.msra.mxu0 0
        %1154 = vmatprep.subr.bf16.mxu0 0
        %1155 = vmatpush1.bf16.msra.mxu0 0
        %1156 = vmatprep.subr.bf16.mxu0 0
        %1157 = vmatpush1.bf16.msra.mxu0 0
        %1158 = vmatprep.subr.bf16.mxu0 0
        %1159 = vmatpush1.bf16.msra.mxu0 0
        %1160 = vmatprep.subr.bf16.mxu0 0
        %1161 = vmatpush1.bf16.msra.mxu0 0
        %1162 = vmatprep.subr.bf16.mxu0 0
        %1163 = vmatpush1.bf16.msra.mxu0 0
        %1164 = vmatprep.subr.bf16.mxu0 0
        %1165 = vmatpush1.bf16.msra.mxu0 0
        %1166 = vmatprep.subr.bf16.mxu0 0
        %1167 = vmatpush1.bf16.msra.mxu0 0
        %1168 = vmatprep.mubr.bf16.mxu0 0
        %1169 = vmatmul.mubr.bf16.gmra.mrb[0].mxu0 %v1131
        %v1170 = vpop.f32.mrb[0].mxu0
        %v1171 = vadd.f32 0.0, %v1170
        %v1172 = vpop.f32.mrb[0].mxu0
        %v1173 = vpop.f32.mrb[0].mxu0
        %v1174 = vpop.f32.mrb[0].mxu0
        %1175 = vdwg.mxu0
        %1176 = vrot.lane.b32.xlu0 %v1067, 120
        %v1177 = vpop.permute.xlu0 %1176
        %1178 = vrot.lane.b32.xlu0 %v1067, 88
        %v1179 = vpop.permute.xlu0 %1178
        %v1181 = vsel %vm606, %v1177, 0
        %v1184 = vsel %vm606, %v1179, 0
        %1186 = vmatprep.subr.bf16.mxu0 0
        %1187 = vmatpush1.bf16.xpose.msra.mxu0 %v1184
        %1188 = vmatprep.subr.bf16.mxu0 0
        %1189 = vmatpush1.bf16.xpose.msra.mxu0 0
        %1190 = vmatprep.subr.bf16.mxu0 0
        %1191 = vmatpush1.bf16.xpose.msra.mxu0 0
        %1192 = vmatprep.subr.bf16.mxu0 0
        %1193 = vmatpush1.bf16.xpose.msra.mxu0 0
        %1194 = vmatprep.subr.bf16.mxu0 0
        %1195 = vmatpush1.bf16.xpose.msra.mxu0 0
        %1196 = vmatprep.subr.bf16.mxu0 0
        %1197 = vmatpush1.bf16.xpose.msra.mxu0 0
        %1198 = vmatprep.subr.bf16.mxu0 0
        %1199 = vmatpush1.bf16.xpose.msra.mxu0 0
        %1200 = vmatprep.subr.bf16.mxu0 0
        %1201 = vmatpush1.bf16.xpose.msra.mxu0 0
        %1202 = vmatprep.subr.bf16.mxu0 0
        %1203 = vmatpush1.bf16.xpose.msra.mxu0 0
        %1204 = vmatprep.subr.bf16.mxu0 0
        %1205 = vmatpush1.bf16.xpose.msra.mxu0 0
        %1206 = vmatprep.subr.bf16.mxu0 0
        %1207 = vmatpush1.bf16.xpose.msra.mxu0 0
        %1208 = vmatprep.subr.bf16.mxu0 0
        %1209 = vmatpush1.bf16.xpose.msra.mxu0 0
        %1210 = vmatprep.subr.bf16.mxu0 0
        %1211 = vmatpush1.bf16.xpose.msra.mxu0 0
        %1212 = vmatprep.subr.bf16.mxu0 0
        %1213 = vmatpush1.bf16.xpose.msra.mxu0 0
        %1214 = vmatprep.subr.bf16.mxu0 0
        %1215 = vmatpush1.bf16.xpose.msra.mxu0 0
        %1216 = vmatprep.subr.bf16.mxu0 0
        %1217 = vmatpush1.bf16.xpose.msra.mxu0 0
        %1218 = vmatprep.mubr.bf16.mxu0 0
        %1219 = vmatmul.mubr.bf16.gmra.mrb[0].mxu0 %v1181
        %v1220 = vpop.f32.mrb[0].mxu0
        %v1221 = vadd.f32 %v1065, %v1220
        %v1222 = vpop.f32.mrb[0].mxu0
        %v1223 = vpop.f32.mrb[0].mxu0
        %v1224 = vpop.f32.mrb[0].mxu0
        %1225 = vdwg.mxu0
        %v1226 = vsel %vm606, %v1221, -inf
        %1227 = vmax.xlane.f32.xlu0 %v1226
        %v1228 = vpop.xlane.xlu0 %1227
        %v1229 = vsub.f32 %v1221, %v1228
        %v1230 = vmul.f32 %v1229, 1.442695
        %v1231 = vpow.pop %v1230
        %v1232 = vsel %vm606, %v1231, 0.0
        %1233 = vadd.xlane.f32.xlu0 %v1232
        %v1234 = vpop.xlane.xlu0 %1233
        %v1235 = vrcp.pop %v1234
        %v1236 = vmul.f32 %v1231, %v1235
        %v1237 = vpack.c.bf16 %v1236, %v1236
        %1238 = vrot.lane.b32.xlu0 %v1067, 56
        %v1239 = vpop.permute.xlu0 %1238
        %v1241 = vsel %vm606, %v1237, 0
        %v1244 = vsel %vm670, %v1239, 0
        %1246 = vmatprep.subr.bf16.mxu0 0
        %1247 = vmatpush1.bf16.msra.mxu0 %v1244
        %1248 = vmatprep.subr.bf16.mxu0 0
        %1249 = vmatpush1.bf16.msra.mxu0 0
        %1250 = vmatprep.subr.bf16.mxu0 0
        %1251 = vmatpush1.bf16.msra.mxu0 0
        %1252 = vmatprep.subr.bf16.mxu0 0
        %1253 = vmatpush1.bf16.msra.mxu0 0
        %1254 = vmatprep.subr.bf16.mxu0 0
        %1255 = vmatpush1.bf16.msra.mxu0 0
        %1256 = vmatprep.subr.bf16.mxu0 0
        %1257 = vmatpush1.bf16.msra.mxu0 0
        %1258 = vmatprep.subr.bf16.mxu0 0
        %1259 = vmatpush1.bf16.msra.mxu0 0
        %1260 = vmatprep.subr.bf16.mxu0 0
        %1261 = vmatpush1.bf16.msra.mxu0 0
        %1262 = vmatprep.subr.bf16.mxu0 0
        %1263 = vmatpush1.bf16.msra.mxu0 0
        %1264 = vmatprep.subr.bf16.mxu0 0
        %1265 = vmatpush1.bf16.msra.mxu0 0
        %1266 = vmatprep.subr.bf16.mxu0 0
        %1267 = vmatpush1.bf16.msra.mxu0 0
        %1268 = vmatprep.subr.bf16.mxu0 0
        %1269 = vmatpush1.bf16.msra.mxu0 0
        %1270 = vmatprep.subr.bf16.mxu0 0
        %1271 = vmatpush1.bf16.msra.mxu0 0
        %1272 = vmatprep.subr.bf16.mxu0 0
        %1273 = vmatpush1.bf16.msra.mxu0 0
        %1274 = vmatprep.subr.bf16.mxu0 0
        %1275 = vmatpush1.bf16.msra.mxu0 0
        %1276 = vmatprep.subr.bf16.mxu0 0
        %1277 = vmatpush1.bf16.msra.mxu0 0
        %1278 = vmatprep.mubr.bf16.mxu0 0
        %1279 = vmatmul.mubr.bf16.gmra.mrb[0].mxu0 %v1241
        %v1280 = vpop.f32.mrb[0].mxu0
        %v1281 = vadd.f32 0.0, %v1280
        %v1282 = vpop.f32.mrb[0].mxu0
        %v1283 = vpop.f32.mrb[0].mxu0
        %v1284 = vpop.f32.mrb[0].mxu0
        %1285 = vdwg.mxu0
        %1286 = vrot.lane.b32.xlu0 %v1067, 112
        %v1287 = vpop.permute.xlu0 %1286
        %1288 = vrot.lane.b32.xlu0 %v1067, 80
        %v1289 = vpop.permute.xlu0 %1288
        %v1291 = vsel %vm606, %v1287, 0
        %v1294 = vsel %vm606, %v1289, 0
        %1296 = vmatprep.subr.bf16.mxu0 0
        %1297 = vmatpush1.bf16.xpose.msra.mxu0 %v1294
        %1298 = vmatprep.subr.bf16.mxu0 0
        %1299 = vmatpush1.bf16.xpose.msra.mxu0 0
        %1300 = vmatprep.subr.bf16.mxu0 0
        %1301 = vmatpush1.bf16.xpose.msra.mxu0 0
        %1302 = vmatprep.subr.bf16.mxu0 0
        %1303 = vmatpush1.bf16.xpose.msra.mxu0 0
        %1304 = vmatprep.subr.bf16.mxu0 0
        %1305 = vmatpush1.bf16.xpose.msra.mxu0 0
        %1306 = vmatprep.subr.bf16.mxu0 0
        %1307 = vmatpush1.bf16.xpose.msra.mxu0 0
        %1308 = vmatprep.subr.bf16.mxu0 0
        %1309 = vmatpush1.bf16.xpose.msra.mxu0 0
        %1310 = vmatprep.subr.bf16.mxu0 0
        %1311 = vmatpush1.bf16.xpose.msra.mxu0 0
        %1312 = vmatprep.subr.bf16.mxu0 0
        %1313 = vmatpush1.bf16.xpose.msra.mxu0 0
        %1314 = vmatprep.subr.bf16.mxu0 0
        %1315 = vmatpush1.bf16.xpose.msra.mxu0 0
        %1316 = vmatprep.subr.bf16.mxu0 0
        %1317 = vmatpush1.bf16.xpose.msra.mxu0 0
        %1318 = vmatprep.subr.bf16.mxu0 0
        %1319 = vmatpush1.bf16.xpose.msra.mxu0 0
        %1320 = vmatprep.subr.bf16.mxu0 0
        %1321 = vmatpush1.bf16.xpose.msra.mxu0 0
        %1322 = vmatprep.subr.bf16.mxu0 0
        %1323 = vmatpush1.bf16.xpose.msra.mxu0 0
        %1324 = vmatprep.subr.bf16.mxu0 0
        %1325 = vmatpush1.bf16.xpose.msra.mxu0 0
        %1326 = vmatprep.subr.bf16.mxu0 0
        %1327 = vmatpush1.bf16.xpose.msra.mxu0 0
        %1328 = vmatprep.mubr.bf16.mxu0 0
        %1329 = vmatmul.mubr.bf16.gmra.mrb[0].mxu0 %v1291
        %v1330 = vpop.f32.mrb[0].mxu0
        %v1331 = vadd.f32 %v1065, %v1330
        %v1332 = vpop.f32.mrb[0].mxu0
        %v1333 = vpop.f32.mrb[0].mxu0
        %v1334 = vpop.f32.mrb[0].mxu0
        %1335 = vdwg.mxu0
        %v1336 = vsel %vm606, %v1331, -inf
        %1337 = vmax.xlane.f32.xlu0 %v1336
        %v1338 = vpop.xlane.xlu0 %1337
        %v1339 = vsub.f32 %v1331, %v1338
        %v1340 = vmul.f32 %v1339, 1.442695
        %v1341 = vpow.pop %v1340
        %v1342 = vsel %vm606, %v1341, 0.0
        %1343 = vadd.xlane.f32.xlu0 %v1342
        %v1344 = vpop.xlane.xlu0 %1343
        %v1345 = vrcp.pop %v1344
        %v1346 = vmul.f32 %v1341, %v1345
        %v1347 = vpack.c.bf16 %v1346, %v1346
        %1348 = vrot.lane.b32.xlu0 %v1067, 48
        %v1349 = vpop.permute.xlu0 %1348
        %v1351 = vsel %vm606, %v1347, 0
        %v1354 = vsel %vm670, %v1349, 0
        %1356 = vmatprep.subr.bf16.mxu0 0
        %1357 = vmatpush1.bf16.msra.mxu0 %v1354
        %1358 = vmatprep.subr.bf16.mxu0 0
        %1359 = vmatpush1.bf16.msra.mxu0 0
        %1360 = vmatprep.subr.bf16.mxu0 0
        %1361 = vmatpush1.bf16.msra.mxu0 0
        %1362 = vmatprep.subr.bf16.mxu0 0
        %1363 = vmatpush1.bf16.msra.mxu0 0
        %1364 = vmatprep.subr.bf16.mxu0 0
        %1365 = vmatpush1.bf16.msra.mxu0 0
        %1366 = vmatprep.subr.bf16.mxu0 0
        %1367 = vmatpush1.bf16.msra.mxu0 0
        %1368 = vmatprep.subr.bf16.mxu0 0
        %1369 = vmatpush1.bf16.msra.mxu0 0
        %1370 = vmatprep.subr.bf16.mxu0 0
        %1371 = vmatpush1.bf16.msra.mxu0 0
        %1372 = vmatprep.subr.bf16.mxu0 0
        %1373 = vmatpush1.bf16.msra.mxu0 0
        %1374 = vmatprep.subr.bf16.mxu0 0
        %1375 = vmatpush1.bf16.msra.mxu0 0
        %1376 = vmatprep.subr.bf16.mxu0 0
        %1377 = vmatpush1.bf16.msra.mxu0 0
        %1378 = vmatprep.subr.bf16.mxu0 0
        %1379 = vmatpush1.bf16.msra.mxu0 0
        %1380 = vmatprep.subr.bf16.mxu0 0
        %1381 = vmatpush1.bf16.msra.mxu0 0
        %1382 = vmatprep.subr.bf16.mxu0 0
        %1383 = vmatpush1.bf16.msra.mxu0 0
        %1384 = vmatprep.subr.bf16.mxu0 0
        %1385 = vmatpush1.bf16.msra.mxu0 0
        %1386 = vmatprep.subr.bf16.mxu0 0
        %1387 = vmatpush1.bf16.msra.mxu0 0
        %1388 = vmatprep.mubr.bf16.mxu0 0
        %1389 = vmatmul.mubr.bf16.gmra.mrb[0].mxu0 %v1351
        %v1390 = vpop.f32.mrb[0].mxu0
        %v1391 = vadd.f32 0.0, %v1390
        %v1392 = vpop.f32.mrb[0].mxu0
        %v1393 = vpop.f32.mrb[0].mxu0
        %v1394 = vpop.f32.mrb[0].mxu0
        %1395 = vdwg.mxu0
        %1396 = vrot.lane.b32.xlu0 %v1067, 104
        %v1397 = vpop.permute.xlu0 %1396
        %1398 = vrot.lane.b32.xlu0 %v1067, 72
        %v1399 = vpop.permute.xlu0 %1398
        %v1401 = vsel %vm606, %v1397, 0
        %v1404 = vsel %vm606, %v1399, 0
        %1406 = vmatprep.subr.bf16.mxu0 0
        %1407 = vmatpush1.bf16.xpose.msra.mxu0 %v1404
        %1408 = vmatprep.subr.bf16.mxu0 0
        %1409 = vmatpush1.bf16.xpose.msra.mxu0 0
        %1410 = vmatprep.subr.bf16.mxu0 0
        %1411 = vmatpush1.bf16.xpose.msra.mxu0 0
        %1412 = vmatprep.subr.bf16.mxu0 0
        %1413 = vmatpush1.bf16.xpose.msra.mxu0 0
        %1414 = vmatprep.subr.bf16.mxu0 0
        %1415 = vmatpush1.bf16.xpose.msra.mxu0 0
        %1416 = vmatprep.subr.bf16.mxu0 0
        %1417 = vmatpush1.bf16.xpose.msra.mxu0 0
        %1418 = vmatprep.subr.bf16.mxu0 0
        %1419 = vmatpush1.bf16.xpose.msra.mxu0 0
        %1420 = vmatprep.subr.bf16.mxu0 0
        %1421 = vmatpush1.bf16.xpose.msra.mxu0 0
        %1422 = vmatprep.subr.bf16.mxu0 0
        %1423 = vmatpush1.bf16.xpose.msra.mxu0 0
        %1424 = vmatprep.subr.bf16.mxu0 0
        %1425 = vmatpush1.bf16.xpose.msra.mxu0 0
        %1426 = vmatprep.subr.bf16.mxu0 0
        %1427 = vmatpush1.bf16.xpose.msra.mxu0 0
        %1428 = vmatprep.subr.bf16.mxu0 0
        %1429 = vmatpush1.bf16.xpose.msra.mxu0 0
        %1430 = vmatprep.subr.bf16.mxu0 0
        %1431 = vmatpush1.bf16.xpose.msra.mxu0 0
        %1432 = vmatprep.subr.bf16.mxu0 0
        %1433 = vmatpush1.bf16.xpose.msra.mxu0 0
        %1434 = vmatprep.subr.bf16.mxu0 0
        %1435 = vmatpush1.bf16.xpose.msra.mxu0 0
        %1436 = vmatprep.subr.bf16.mxu0 0
        %1437 = vmatpush1.bf16.xpose.msra.mxu0 0
        %1438 = vmatprep.mubr.bf16.mxu0 0
        %1439 = vmatmul.mubr.bf16.gmra.mrb[0].mxu0 %v1401
        %v1440 = vpop.f32.mrb[0].mxu0
        %v1441 = vadd.f32 %v1065, %v1440
        %v1442 = vpop.f32.mrb[0].mxu0
        %v1443 = vpop.f32.mrb[0].mxu0
        %v1444 = vpop.f32.mrb[0].mxu0
        %1445 = vdwg.mxu0
        %v1446 = vsel %vm606, %v1441, -inf
        %1447 = vmax.xlane.f32.xlu0 %v1446
        %v1448 = vpop.xlane.xlu0 %1447
        %v1449 = vsub.f32 %v1441, %v1448
        %v1450 = vmul.f32 %v1449, 1.442695
        %v1451 = vpow.pop %v1450
        %v1452 = vsel %vm606, %v1451, 0.0
        %1453 = vadd.xlane.f32.xlu0 %v1452
        %v1454 = vpop.xlane.xlu0 %1453
        %v1455 = vrcp.pop %v1454
        %v1456 = vmul.f32 %v1451, %v1455
        %v1457 = vpack.c.bf16 %v1456, %v1456
        %1458 = vrot.lane.b32.xlu0 %v1067, 40
        %v1459 = vpop.permute.xlu0 %1458
        %v1461 = vsel %vm606, %v1457, 0
        %v1464 = vsel %vm670, %v1459, 0
        %1466 = vmatprep.subr.bf16.mxu0 0
        %1467 = vmatpush1.bf16.msra.mxu0 %v1464
        %1468 = vmatprep.subr.bf16.mxu0 0
        %1469 = vmatpush1.bf16.msra.mxu0 0
        %1470 = vmatprep.subr.bf16.mxu0 0
        %1471 = vmatpush1.bf16.msra.mxu0 0
        %1472 = vmatprep.subr.bf16.mxu0 0
        %1473 = vmatpush1.bf16.msra.mxu0 0
        %1474 = vmatprep.subr.bf16.mxu0 0
        %1475 = vmatpush1.bf16.msra.mxu0 0
        %1476 = vmatprep.subr.bf16.mxu0 0
        %1477 = vmatpush1.bf16.msra.mxu0 0
        %1478 = vmatprep.subr.bf16.mxu0 0
        %1479 = vmatpush1.bf16.msra.mxu0 0
        %1480 = vmatprep.subr.bf16.mxu0 0
        %1481 = vmatpush1.bf16.msra.mxu0 0
        %1482 = vmatprep.subr.bf16.mxu0 0
        %1483 = vmatpush1.bf16.msra.mxu0 0
        %1484 = vmatprep.subr.bf16.mxu0 0
        %1485 = vmatpush1.bf16.msra.mxu0 0
        %1486 = vmatprep.subr.bf16.mxu0 0
        %1487 = vmatpush1.bf16.msra.mxu0 0
        %1488 = vmatprep.subr.bf16.mxu0 0
        %1489 = vmatpush1.bf16.msra.mxu0 0
        %1490 = vmatprep.subr.bf16.mxu0 0
        %1491 = vmatpush1.bf16.msra.mxu0 0
        %1492 = vmatprep.subr.bf16.mxu0 0
        %1493 = vmatpush1.bf16.msra.mxu0 0
        %1494 = vmatprep.subr.bf16.mxu0 0
        %1495 = vmatpush1.bf16.msra.mxu0 0
        %1496 = vmatprep.subr.bf16.mxu0 0
        %1497 = vmatpush1.bf16.msra.mxu0 0
        %1498 = vmatprep.mubr.bf16.mxu0 0
        %1499 = vmatmul.mubr.bf16.gmra.mrb[0].mxu0 %v1461
        %v1500 = vpop.f32.mrb[0].mxu0
        %v1501 = vadd.f32 0.0, %v1500
        %v1502 = vpop.f32.mrb[0].mxu0
        %v1503 = vpop.f32.mrb[0].mxu0
        %v1504 = vpop.f32.mrb[0].mxu0
        %1505 = vdwg.mxu0
        %1507 = vrot.lane.b32.xlu0 %v1281, 8
        %v1508 = vpop.permute.xlu0 %1507
        %1511 = vrot.lane.b32.xlu0 %v1391, 16
        %v1512 = vpop.permute.xlu0 %1511
        %1515 = vrot.lane.b32.xlu0 %v1501, 24
        %v1516 = vpop.permute.xlu0 %1515
        %v1518 = vsel %vm606, %v1171, %v1508
        %v1519 = vsel %vm1057, %v1518, %v1512
        %v1520 = vsel %vm1059, %v1519, %v1516
        %v1521 = vpack.c.bf16 %v1520, %v1060
        %v1522 = vld [vmem:[%s493] sm:$0xf]
        %v1523 = vld [vmem:[%s493 + $0x4] sm:$0xf]
        %v1524 = vld [vmem:[%s493 + $0x8] sm:$0xf]
        %v1525 = vld [vmem:[%s493 + $0xc] sm:$0xf]
        %v1526 = vlaneseq
        %v1527 = vshrl.u32 %v1526, 7
        %v1528 = vsub.s32 0, %v1527
        %v1529 = vrot.slane %v524, %v1528
        %v1534 = vunpack.c.l.b16 %v1522
        %v1535 = vunpack.c.l.b16 %v1523
        %v1536 = vunpack.c.l.b16 %v1524
        %v1537 = vunpack.c.l.b16 %v1525
        %v1538 = vpack.c.b16 %v1535, %v1534
        %v1539 = vpack.c.b16 %v1537, %v1536
        %v1543 = vsel %vm551, %v1521, 0
        %1545 = vmatprep.subr.bf16.mxu0 0
        %1546 = vmatpush1.bf16.msra.mxu0 %v1538
        %1547 = vmatprep.subr.bf16.mxu0 0
        %1548 = vmatpush1.bf16.msra.mxu0 %v1539
        %1549 = vmatprep.subr.bf16.mxu0 0
        %1550 = vmatpush1.bf16.msra.mxu0 0
        %1551 = vmatprep.subr.bf16.mxu0 0
        %1552 = vmatpush1.bf16.msra.mxu0 0
        %1553 = vmatprep.subr.bf16.mxu0 0
        %1554 = vmatpush1.bf16.msra.mxu0 0
        %1555 = vmatprep.subr.bf16.mxu0 0
        %1556 = vmatpush1.bf16.msra.mxu0 0
        %1557 = vmatprep.subr.bf16.mxu0 0
        %1558 = vmatpush1.bf16.msra.mxu0 0
        %1559 = vmatprep.subr.bf16.mxu0 0
        %1560 = vmatpush1.bf16.msra.mxu0 0
        %1561 = vmatprep.subr.bf16.mxu0 0
        %1562 = vmatpush1.bf16.msra.mxu0 0
        %1563 = vmatprep.subr.bf16.mxu0 0
        %1564 = vmatpush1.bf16.msra.mxu0 0
        %1565 = vmatprep.subr.bf16.mxu0 0
        %1566 = vmatpush1.bf16.msra.mxu0 0
        %1567 = vmatprep.subr.bf16.mxu0 0
        %1568 = vmatpush1.bf16.msra.mxu0 0
        %1569 = vmatprep.subr.bf16.mxu0 0
        %1570 = vmatpush1.bf16.msra.mxu0 0
        %1571 = vmatprep.subr.bf16.mxu0 0
        %1572 = vmatpush1.bf16.msra.mxu0 0
        %1573 = vmatprep.subr.bf16.mxu0 0
        %1574 = vmatpush1.bf16.msra.mxu0 0
        %1575 = vmatprep.subr.bf16.mxu0 0
        %1576 = vmatpush1.bf16.msra.mxu0 0
        %1577 = vmatprep.mubr.bf16.mxu0 0
        %1578 = vmatmul.mubr.bf16.gmra.mrb[0].mxu0 %v1543
        %v1579 = vpop.f32.mrb[0].mxu0
        %v1580 = vadd.f32 %v1529, %v1579
        %v1581 = vpop.f32.mrb[0].mxu0
        %v1582 = vpop.f32.mrb[0].mxu0
        %v1583 = vadd.f32 %v1529, %v1582
        %v1584 = vpop.f32.mrb[0].mxu0
        %1585 = vdwg.mxu0
        %v1586 = vadd.f32 %v1580, %v522
        %v1587 = vadd.f32 %v1583, %v523
        %v1588 = vsel %vm551, %v1586, 0.0
        %1589 = vadd.xlane.f32.xlu0 %v1588
        %v1590 = vpop.xlane.xlu0 %1589
        %v1591 = vsel %vm551, %v1587, 0.0
        %1592 = vadd.xlane.f32.xlu0 %v1591
        %v1593 = vpop.xlane.xlu0 %1592
        %v1594 = vrcp.pop 32.0
        %v1595 = vmul.f32 %v1590, %v1594
        %v1596 = vmul.f32 %v1593, %v1594
        %v1597 = vsub.f32 %v1586, %v1595
        %v1598 = vsub.f32 %v1587, %v1596
        %v1599 = vmul.f32 %v1597, %v1597
        %v1600 = vmul.f32 %v1598, %v1598
        %v1601 = vsel %vm551, %v1599, 0.0
        %1602 = vadd.xlane.f32.xlu0 %v1601
        %v1603 = vpop.xlane.xlu0 %1602
        %v1604 = vsel %vm551, %v1600, 0.0
        %1605 = vadd.xlane.f32.xlu0 %v1604
        %v1606 = vpop.xlane.xlu0 %1605
        %v1607 = vmul.f32 %v1603, %v1594
        %v1608 = vmul.f32 %v1606, %v1594
        %v1609 = vadd.f32 %v1607, 1e-12
        %v1610 = vadd.f32 %v1608, 1e-12
        %v1611 = vrsqrt.pop %v1609
        %v1612 = vrsqrt.pop %v1610
        %v1613 = vmul.f32 %v1597, %v1611
        %v1614 = vmul.f32 %v1598, %v1612
        %v1615 = vlaneseq
        %v1616 = vshrl.u32 %v1615, 7
        %v1617 = vsub.s32 1, %v1616
        %v1618 = vrot.slane %v524, %v1617
        %v1619 = vmul.f32 %v1613, %v1618
        %v1620 = vmul.f32 %v1614, %v1618
        %v1621 = vlaneseq
        %v1622 = vshrl.u32 %v1621, 7
        %v1623 = vsub.s32 2, %v1622
        %v1624 = vrot.slane %v524, %v1623
        %v1625 = vadd.f32 %v1619, %v1624
        %v1626 = vadd.f32 %v1620, %v1624
        %v1627 = vpack.c.bf16 %v1626, %v1625
        %v1628 = vld [vmem:[%s498] sm:$0xf]
        %v1629 = vld [vmem:[%s498 + $0x4] sm:$0xf]
        %v1630 = vld [vmem:[%s498 + $0x8] sm:$0xf]
        %v1631 = vld [vmem:[%s498 + $0xc] sm:$0xf]
        %v1632 = vld [vmem:[%s510] sm:$0x1]
        %v1634 = vlaneseq
        %v1635 = vshrl.u32 %v1634, 7
        %v1636 = vsub.s32 0, %v1635
        %v1637 = vrot.slane %v1632, %v1636
        %v1643 = vunpack.c.l.b16 %v1628
        %v1644 = vunpack.c.l.b16 %v1629
        %v1645 = vunpack.c.l.b16 %v1630
        %v1646 = vunpack.c.l.b16 %v1631
        %v1647 = vpack.c.b16 %v1644, %v1643
        %v1648 = vpack.c.b16 %v1646, %v1645
        %v1652 = vsel %vm551, %v1627, 0
        %1654 = vmatprep.subr.bf16.mxu0 0
        %1655 = vmatpush1.bf16.msra.mxu0 %v1647
        %1656 = vmatprep.subr.bf16.mxu0 0
        %1657 = vmatpush1.bf16.msra.mxu0 %v1648
        %1658 = vmatprep.subr.bf16.mxu0 0
        %1659 = vmatpush1.bf16.msra.mxu0 0
        %1660 = vmatprep.subr.bf16.mxu0 0
        %1661 = vmatpush1.bf16.msra.mxu0 0
        %1662 = vmatprep.subr.bf16.mxu0 0
        %1663 = vmatpush1.bf16.msra.mxu0 0
        %1664 = vmatprep.subr.bf16.mxu0 0
        %1665 = vmatpush1.bf16.msra.mxu0 0
        %1666 = vmatprep.subr.bf16.mxu0 0
        %1667 = vmatpush1.bf16.msra.mxu0 0
        %1668 = vmatprep.subr.bf16.mxu0 0
        %1669 = vmatpush1.bf16.msra.mxu0 0
        %1670 = vmatprep.subr.bf16.mxu0 0
        %1671 = vmatpush1.bf16.msra.mxu0 0
        %1672 = vmatprep.subr.bf16.mxu0 0
        %1673 = vmatpush1.bf16.msra.mxu0 0
        %1674 = vmatprep.subr.bf16.mxu0 0
        %1675 = vmatpush1.bf16.msra.mxu0 0
        %1676 = vmatprep.subr.bf16.mxu0 0
        %1677 = vmatpush1.bf16.msra.mxu0 0
        %1678 = vmatprep.subr.bf16.mxu0 0
        %1679 = vmatpush1.bf16.msra.mxu0 0
        %1680 = vmatprep.subr.bf16.mxu0 0
        %1681 = vmatpush1.bf16.msra.mxu0 0
        %1682 = vmatprep.subr.bf16.mxu0 0
        %1683 = vmatpush1.bf16.msra.mxu0 0
        %1684 = vmatprep.subr.bf16.mxu0 0
        %1685 = vmatpush1.bf16.msra.mxu0 0
        %1686 = vmatprep.mubr.bf16.mxu0 0
        %1687 = vmatmul.mubr.bf16.gmra.mrb[0].mxu0 %v1652
        %v1688 = vpop.f32.mrb[0].mxu0
        %v1689 = vadd.f32 %v1637, %v1688
        %v1690 = vpop.f32.mrb[0].mxu0
        %v1691 = vpop.f32.mrb[0].mxu0
        %v1692 = vadd.f32 %v1637, %v1691
        %v1693 = vpop.f32.mrb[0].mxu0
        %1694 = vdwg.mxu0
        %v1695 = vmul.f32 %v1689, 0.5
        %v1696 = vmul.f32 %v1692, 0.5
        %v1697 = vmul.f32 %v1689, 0.044715
        %v1698 = vmul.f32 %v1692, 0.044715
        %v1699 = vmul.f32 %v1697, %v1689
        %v1700 = vmul.f32 %v1698, %v1692
        %v1701 = vmul.f32 %v1699, %v1689
        %v1702 = vmul.f32 %v1700, %v1692
        %v1703 = vadd.f32 %v1689, %v1701
        %v1704 = vadd.f32 %v1692, %v1702
        %v1705 = vmul.f32 %v1703, 0.7978846
        %v1706 = vmul.f32 %v1704, 0.7978846
        %v1707 = vtanh.pop %v1705
        %v1708 = vtanh.pop %v1706
        %v1709 = vadd.f32 %v1707, 1.0
        %v1710 = vadd.f32 %v1708, 1.0
        %v1711 = vmul.f32 %v1695, %v1709
        %v1712 = vmul.f32 %v1696, %v1710
        %v1713 = vpack.c.bf16 %v1712, %v1711
        %v1714 = vld [vmem:[%s503] sm:$0xf]
        %v1715 = vld [vmem:[%s503 + $0x4] sm:$0xf]
        %v1716 = vld [vmem:[%s503 + $0x8] sm:$0xf]
        %v1717 = vld [vmem:[%s503 + $0xc] sm:$0xf]
        %v1718 = vld [vmem:[%s503 + $0x10] sm:$0xf]
        %v1719 = vld [vmem:[%s503 + $0x14] sm:$0xf]
        %v1720 = vld [vmem:[%s503 + $0x18] sm:$0xf]
        %v1721 = vld [vmem:[%s503 + $0x1c] sm:$0xf]
        %v1722 = vlaneseq
        %v1723 = vshrl.u32 %v1722, 7
        %v1724 = vsub.s32 3, %v1723
        %v1725 = vrot.slane %v524, %v1724
        %v1734 = vunpack.c.l.b16 %v1714
        %v1735 = vunpack.c.l.b16 %v1715
        %v1736 = vunpack.c.l.b16 %v1716
        %v1737 = vunpack.c.l.b16 %v1717
        %v1738 = vunpack.c.l.b16 %v1718
        %v1739 = vunpack.c.l.b16 %v1719
        %v1740 = vunpack.c.l.b16 %v1720
        %v1741 = vunpack.c.l.b16 %v1721
        %v1742 = vpack.c.b16 %v1735, %v1734
        %v1743 = vpack.c.b16 %v1737, %v1736
        %v1744 = vpack.c.b16 %v1739, %v1738
        %v1745 = vpack.c.b16 %v1741, %v1740
        %vm1750 = vcmask 523264
        %v1752 = vsel %vm1750, %v1713, 0
        %1754 = vmatprep.subr.bf16.mxu0 0
        %1755 = vmatpush1.bf16.msra.mxu0 %v1742
        %1756 = vmatprep.subr.bf16.mxu0 0
        %1757 = vmatpush1.bf16.msra.mxu0 %v1743
        %1758 = vmatprep.subr.bf16.mxu0 0
        %1759 = vmatpush1.bf16.msra.mxu0 %v1744
        %1760 = vmatprep.subr.bf16.mxu0 0
        %1761 = vmatpush1.bf16.msra.mxu0 %v1745
        %1762 = vmatprep.subr.bf16.mxu0 0
        %1763 = vmatpush1.bf16.msra.mxu0 0
        %1764 = vmatprep.subr.bf16.mxu0 0
        %1765 = vmatpush1.bf16.msra.mxu0 0
        %1766 = vmatprep.subr.bf16.mxu0 0
        %1767 = vmatpush1.bf16.msra.mxu0 0
        %1768 = vmatprep.subr.bf16.mxu0 0
        %1769 = vmatpush1.bf16.msra.mxu0 0
        %1770 = vmatprep.subr.bf16.mxu0 0
        %1771 = vmatpush1.bf16.msra.mxu0 0
        %1772 = vmatprep.subr.bf16.mxu0 0
        %1773 = vmatpush1.bf16.msra.mxu0 0
        %1774 = vmatprep.subr.bf16.mxu0 0
        %1775 = vmatpush1.bf16.msra.mxu0 0
        %1776 = vmatprep.subr.bf16.mxu0 0
        %1777 = vmatpush1.bf16.msra.mxu0 0
        %1778 = vmatprep.subr.bf16.mxu0 0
        %1779 = vmatpush1.bf16.msra.mxu0 0
        %1780 = vmatprep.subr.bf16.mxu0 0
        %1781 = vmatpush1.bf16.msra.mxu0 0
        %1782 = vmatprep.subr.bf16.mxu0 0
        %1783 = vmatpush1.bf16.msra.mxu0 0
        %1784 = vmatprep.subr.bf16.mxu0 0
        %1785 = vmatpush1.bf16.msra.mxu0 0
        %1786 = vmatprep.mubr.bf16.mxu0 0
        %1787 = vmatmul.mubr.bf16.gmra.mrb[0].mxu0 %v1752
        %v1788 = vpop.f32.mrb[0].mxu0
        %v1789 = vadd.f32 %v1725, %v1788
        %v1790 = vpop.f32.mrb[0].mxu0
        %v1791 = vpop.f32.mrb[0].mxu0
        %v1792 = vadd.f32 %v1725, %v1791
        %v1793 = vpop.f32.mrb[0].mxu0
        %1794 = vdwg.mxu0
        %v1795 = vadd.f32 %v1789, %v1625
        %v1796 = vadd.f32 %v1792, %v1626
        %v1797 = vsel %vm551, %v1795, 0.0
        %1798 = vadd.xlane.f32.xlu0 %v1797
        %v1799 = vpop.xlane.xlu0 %1798
        %v1800 = vsel %vm551, %v1796, 0.0
        %1801 = vadd.xlane.f32.xlu0 %v1800
        %v1802 = vpop.xlane.xlu0 %1801
        %v1803 = vmul.f32 %v1799, %v1594
        %v1804 = vmul.f32 %v1802, %v1594
        %v1805 = vsub.f32 %v1795, %v1803
        %v1806 = vsub.f32 %v1796, %v1804
        %v1807 = vmul.f32 %v1805, %v1805
        %v1808 = vmul.f32 %v1806, %v1806
        %v1809 = vsel %vm551, %v1807, 0.0
        %1810 = vadd.xlane.f32.xlu0 %v1809
        %v1811 = vpop.xlane.xlu0 %1810
        %v1812 = vsel %vm551, %v1808, 0.0
        %1813 = vadd.xlane.f32.xlu0 %v1812
        %v1814 = vpop.xlane.xlu0 %1813
        %v1815 = vmul.f32 %v1811, %v1594
        %v1816 = vmul.f32 %v1814, %v1594
        %v1817 = vadd.f32 %v1815, 1e-12
        %v1818 = vadd.f32 %v1816, 1e-12
        %v1819 = vrsqrt.pop %v1817
        %v1820 = vrsqrt.pop %v1818
        %v1821 = vmul.f32 %v1805, %v1819
        %v1822 = vmul.f32 %v1806, %v1820
        %v1823 = vlaneseq
        %v1824 = vshrl.u32 %v1823, 7
        %v1825 = vsub.s32 4, %v1824
        %v1826 = vrot.slane %v524, %v1825
        %v1827 = vmul.f32 %v1821, %v1826
        %v1828 = vmul.f32 %v1822, %v1826
        %v1829 = vlaneseq
        %v1830 = vshrl.u32 %v1829, 7
        %v1831 = vsub.s32 5, %v1830
        %v1832 = vrot.slane %v524, %v1831
        %v1833 = vadd.f32 %v1827, %v1832
        %v1834 = vadd.f32 %v1828, %v1832
        %1835 = vst.msk [vmem:[#allocation2] sm:$0xff] %vm551, %v1833
        %1836 = vst.msk [vmem:[#allocation2 + $0x8] sm:$0xff] %vm551, %v1834
        %1837 = vst.msk [vmem:[%s472] sm:$0xff] %vm551, %v1833
        %1838 = vst.msk [vmem:[%s472 + $0x8] sm:$0xff] %vm551, %v1834
        %s1839 = sand.u32 %s282, 1
        %s1840 = scalar_lea.sflag [#allocation5], %s1839
        %s1841 = sand.u32 %s282, 1
        %s1842 = smul.addr %s1841, 16
        %s1843 = scalar_lea.vmem [#allocation6], %s1842
        // Predicated region
        $region65: #{tpu_custom_call.1} parent=55 // pred_check
          %p1844 = pneg %p292
        $region66: #{tpu_custom_call.1} parent=55 // pred_check_branch
          %1846 = sbr.rel (%p1844) target = $region68
        $region67: #{tpu_custom_call.1} parent=55 // pred_region
          %s1847 = smul.u32 2, %s30
          %s1849 = ssub.s32 256, 256
          %1850 = vsyncadd %s1840, %s1849
          %s1851 = smul.addr %s31, 2
          %s1852 = sadd.s32 %s1847, %s1851
          %s1853 = smul.addr %s1852, 128
          %s1854 = scalar_lea.hbm %s9, %s1853
          %s1855 = sshll.u32 %s1843, 4
          %s1856 = int_to_ptr.vmem [resolvable:$true] %s1855
          %1861 = dma.vmem_to_hbm [thread:$0]  %s1856, 256, %s1854, %s1840, 128, 128, 8
        $region68: #{tpu_custom_call.1} parent=55 // pred_fallthru
          _
      $region56: #{tpu_custom_call.1} parent=5 // pred_fallthru
        _
      %p1862 = scmp.le.s32.totalorder 2, %s21
      // Predicated region
      $region69: #{tpu_custom_call.1} parent=5 // pred_check
        %p1863 = pneg %p1862
      $region70: #{tpu_custom_call.1} parent=5 // pred_check_branch
        %1865 = sbr.rel (%p1863) target = $region72
      $region71: #{tpu_custom_call.1} parent=5 // pred_region
        %s1866 = ssub.s32 %s21, 2
        // Predicated region
        $region73: #{tpu_custom_call.1} parent=71 // pred_check
          %p1867 = pneg %p298
        $region74: #{tpu_custom_call.1} parent=71 // pred_check_branch
          %1869 = sbr.rel (%p1867) target = $region76
        $region75: #{tpu_custom_call.1} parent=71 // pred_region
          %s1870 = sand.u32 %s283, 1
          %s1871 = scalar_lea.sflag [#allocation5], %s1870
          %s1872 = sand.u32 %s283, 1
          %s1873 = smul.addr %s1872, 16
          %s1874 = scalar_lea.vmem [#allocation6], %s1873
          %1875 = dma.done %s1871, 256
        $region76: #{tpu_custom_call.1} parent=71 // pred_fallthru
          _
      $region72: #{tpu_custom_call.1} parent=5 // pred_fallthru
        _
    $region6: #{tpu_custom_call.1} parent=1 // loop_footer
      %s25 = sadd.s32 1, %s21
    $region7: #{tpu_custom_call.1} parent=1 // loop_footer_branch
      %20 = sbr.rel target = $region3
    $region8: #{tpu_custom_call.1} parent=1 // loop_exit
      _
    %1876 = vsyncpa [#allocation4], 1
    %s1877 = scalar_lea.sflag [#allocation4], 1
    %1878 = vsyncpa %s1877, 1
    %1879 = vsyncpa [#allocation5], 1
    %s1880 = scalar_lea.sflag [#allocation5], 1
    %1881 = vsyncpa %s1880, 1

</llo_original>
